<compile_context>
chip_gen: v5e
topology: v5e:2x2
jax: 0.10.0
libtpu: 0.0.40
codegen_flags: <defaults>
</compile_context>

<pallas_src>
import functools
import math

import jax
import jax.numpy as jnp
from jax.experimental import pallas as pl
from jax.experimental.pallas import tpu as pltpu

LN_EPS = 1e-5            # PyTorch LayerNorm default eps
_SQRT1_2 = 0.7071067811865476


def _erf_approx(x):
    # Abramowitz & Stegun 7.1.26 rational approximation, |error| <= 1.5e-7.
    a1, a2, a3, a4, a5 = (0.254829592, -0.284496736, 1.421413741,
                          -1.453152027, 1.061405429)
    p = 0.3275911
    sgn = jnp.where(x >= 0, 1.0, -1.0)
    z = jnp.abs(x)
    t = 1.0 / (1.0 + p * z)
    poly = ((((a5 * t + a4) * t + a3) * t + a2) * t + a1) * t
    return sgn * (1.0 - poly * jnp.exp(-z * z))


def _gelu_exact(x):
    # TODO(synk): PyTorch nn.GELU() is exact erf; Mosaic has no erf primitive
    # so we use the A&S approximation.  tanh-GELU (EUP tanh) would shave a few
    # VALU ops per element if a ~1e-3 numeric delta were acceptable.
    return 0.5 * x * (1.0 + _erf_approx(x * _SQRT1_2))


def _layer_norm(x, gamma, beta):
    mu = jnp.mean(x, axis=-1, keepdims=True)
    xc = x - mu
    var = jnp.mean(xc * xc, axis=-1, keepdims=True)
    return xc * jax.lax.rsqrt(var + LN_EPS) * gamma + beta


def encoder_layer_kernel(*refs, num_heads, tq, has_pos):
    if has_pos:
        src_ref, pos_ref, *rest = refs
    else:
        src_ref, *rest = refs
        pos_ref = None
    (wq_ref, bq_ref, wk_ref, bk_ref, wv_ref, bv_ref, wo_ref, bo_ref,
     ln1g_ref, ln1b_ref, w1_ref, b1_ref, w2_ref, b2_ref, ln2g_ref, ln2b_ref,
     out_ref, k_scr, v_scr, o_scr) = rest

    L, C = src_ref.shape
    d = C // num_heads
    qt = pl.program_id(1)
    bf16 = jnp.bfloat16
    f32 = jnp.float32

    # ---- per-batch K / V projections: computed once, reused by all q tiles ----
    @pl.when(qt == 0)
    def _():
        x = src_ref[...]                                    # (L, C) f32
        if has_pos:
            kin = x + pos_ref[...]
        else:
            kin = x
        k = jnp.dot(kin.astype(bf16), wk_ref[...],
                    preferred_element_type=f32) + bk_ref[...]
        v = jnp.dot(x.astype(bf16), wv_ref[...],
                    preferred_element_type=f32) + bv_ref[...]
        k_scr[...] = k.astype(bf16)
        v_scr[...] = v.astype(bf16)

    # ---- current query tile (rows [qt*tq, qt*tq+tq)) ----
    if tq == L:                      # single-tile fast path (common AIFI case)
        x_q = src_ref[...]
        pos_q = pos_ref[...] if has_pos else None
    else:
        row0 = pl.multiple_of(qt * tq, tq)
        x_q = src_ref[pl.ds(row0, tq), :]
        pos_q = pos_ref[pl.ds(row0, tq), :] if has_pos else None
    q_in = x_q + pos_q if has_pos else x_q

    # 1/sqrt(head_dim) is folded into wq / bq by the wrapper.
    q = (jnp.dot(q_in.astype(bf16), wq_ref[...],
                 preferred_element_type=f32) + bq_ref[...]).astype(bf16)

    k_all = k_scr[...]                                      # (L, C) bf16
    v_all = v_scr[...]                                      # (L, C) bf16

    # Static unroll over heads; each head's result is stored straight into the
    # o_scr scratch so no per-head (TQ,L)/(TQ,d) value stays live across
    # iterations.  Head-concat is the scratch itself; one fused out-proj below.
    for h in range(num_heads):
        lo = h * d
        s = jax.lax.dot_general(q[:, lo:lo + d], k_all[:, lo:lo + d],
                                (((1,), (1,)), ((), ())),
                                preferred_element_type=f32)       # (TQ, L)
        s = s - jnp.max(s, axis=-1, keepdims=True)
        p = jnp.exp(s)                                            # unnormalized
        inv = pl.reciprocal(jnp.sum(p, axis=-1, keepdims=True), approx=True)
        oh = jnp.dot(p.astype(bf16), v_all[:, lo:lo + d],
                     preferred_element_type=f32) * inv            # (TQ, d)
        o_scr[:, lo:lo + d] = oh.astype(bf16)

    # ---- fused out-projection (K = C) + residual + LayerNorm1 ----
    mha = jnp.dot(o_scr[...], wo_ref[...],
                  preferred_element_type=f32) + bo_ref[...]       # (TQ, C)
    h1 = _layer_norm(x_q + mha, ln1g_ref[...], ln1b_ref[...])

    # ---- feed-forward: fc2(GELU(fc1(h1))) + residual + LayerNorm2 ----
    ff = _gelu_exact(jnp.dot(h1.astype(bf16), w1_ref[...],
                             preferred_element_type=f32) + b1_ref[...])
    ff = jnp.dot(ff.astype(bf16), w2_ref[...],
                 preferred_element_type=f32) + b2_ref[...]
    out_ref[...] = _layer_norm(h1 + ff, ln2g_ref[...], ln2b_ref[...])


def _pick_q_tile(L):
    if L <= 256:
        return L
    for t in range(256, 7, -8):          # largest multiple-of-8 divisor <= 256
        if L % t == 0:
            return t
    return L


def _pick_vmem_limit(L, C, CM, tq, has_pos):
    try:
        cap = int(pltpu.get_tpu_info().vmem_capacity_bytes)
    except Exception:
        cap = 64 * 1024 * 1024           # conservative (v7x-sized) fallback
    weight_bytes = 2 * (4 * C * C + 2 * C * CM)        # bf16 matmul weights
    small_bytes = 4 * (9 * C + CM)                     # f32 biases + LN params
    block_bytes = 4 * (L * C * (2 if has_pos else 1) + tq * C)
    scratch_bytes = 2 * (2 * L * C + tq * C)           # bf16 K/V/O scratch
    temp_bytes = 4 * (6 * tq * C + 3 * tq * L + 3 * tq * CM + 2 * L * C)
    # default pipelining double-buffers every input block / resident weight
    need = 2 * (weight_bytes + small_bytes + block_bytes) + scratch_bytes + temp_bytes
    headroom = 16 * 1024 * 1024
    return int(min(max(cap - headroom, 32 * 1024 * 1024),
                   max(2 * need, 32 * 1024 * 1024)))


def transformer_encoder_layer(src, pos, params, *, num_heads, q_tile=None):
    """src: (B, L, C) f32; pos: None, (1|B, L, C) or (L, C). Returns (B, L, C)."""
    B, L, C = src.shape
    CM = params["w1"].shape[1]
    assert C % num_heads == 0
    d = C // num_heads
    scale = 1.0 / math.sqrt(d)

    src = src.astype(jnp.float32)

    has_pos = pos is not None
    pos_batched = False
    if has_pos:
        pos = jnp.asarray(pos, jnp.float32)
        if pos.ndim == 2:
            pos = pos[None]
        if pos.shape[0] == B and B > 1:
            pos_batched = True           # per-batch pos: stream per grid step
        else:
            pos = pos[:1]                # batch-invariant pos: stays resident

    tq = _pick_q_tile(L) if q_tile is None else q_tile
    assert L % tq == 0, (L, tq)
    assert tq == L or tq % 8 == 0, "q tile must be a multiple of 8 or full L"
    nq = L // tq

    bf16, f32 = jnp.bfloat16, jnp.float32
    # bf16 MXU weights (f32 accumulation in-kernel); 1/sqrt(d) folded into Wq/bq.
    wq = (params["wq"].astype(f32) * scale).astype(bf16)
    bq = params["bq"].astype(f32) * scale
    wk, bk = params["wk"].astype(bf16), params["bk"].astype(f32)
    wv, bv = params["wv"].astype(bf16), params["bv"].astype(f32)
    wo, bo = params["wo"].astype(bf16), params["bo"].astype(f32)
    w1, b1 = params["w1"].astype(bf16), params["b1"].astype(f32)
    w2, b2 = params["w2"].astype(bf16), params["b2"].astype(f32)
    ln1g, ln1b = params["ln1g"].astype(f32), params["ln1b"].astype(f32)
    ln2g, ln2b = params["ln2g"].astype(f32), params["ln2b"].astype(f32)

    def src_map(b, q):
        return (b, 0, 0)

    def out_map(b, q):
        return (b, q, 0)

    def w2d(b, q):
        return (0, 0)

    pos_map = src_map if pos_batched else (lambda b, q: (0, 0, 0))

    in_specs = [pl.BlockSpec((None, L, C), src_map)]
    inputs = [src]
    if has_pos:
        in_specs.append(pl.BlockSpec((None, L, C), pos_map))
        inputs.append(pos)
    # Constant-index weight / bias blocks (resident across the whole grid).
    # TODO(synk): pipeline_mode=pl.Buffered(1) here would drop the default
    # double-buffering of these constant blocks.
    for arr, shp in [(wq, (C, C)), (bq, (1, C)), (wk, (C, C)), (bk, (1, C)),
                     (wv, (C, C)), (bv, (1, C)), (wo, (C, C)), (bo, (1, C)),
                     (ln1g, (1, C)), (ln1b, (1, C)),
                     (w1, (C, CM)), (b1, (1, CM)), (w2, (CM, C)), (b2, (1, C)),
                     (ln2g, (1, C)), (ln2b, (1, C))]:
        in_specs.append(pl.BlockSpec(shp, w2d))
        inputs.append(arr)

    out_specs = pl.BlockSpec((None, tq, C), out_map)

    kernel = functools.partial(encoder_layer_kernel,
                               num_heads=num_heads, tq=tq, has_pos=has_pos)
    out = pl.pallas_call(
        kernel,
        out_shape=jax.ShapeDtypeStruct((B, L, C), jnp.float32),
        grid=(B, nq),
        in_specs=in_specs,
        out_specs=out_specs,
        scratch_shapes=[
            pltpu.VMEM((L, C), bf16),    # K (per-batch, persistent over q tiles)
            pltpu.VMEM((L, C), bf16),    # V
            pltpu.VMEM((tq, C), bf16),   # per-tile head-concat buffer
        ],
        compiler_params=pltpu.CompilerParams(
            # batch shards across TensorCores; q-tile axis must stay ordered
            # so the K/V scratch computed at qtile==0 is reused.
            dimension_semantics=("parallel", "arbitrary"),
            vmem_limit_bytes=_pick_vmem_limit(L, C, CM, tq, has_pos),
        ),
    )(*inputs)
    return out


def reference_encoder_layer(src, pos, params, *, num_heads):
    """Pure-JAX f32 reference mirroring the PyTorch forward_post path."""
    B, L, C = src.shape
    d = C // num_heads
    hp = jax.lax.Precision.HIGHEST
    x = src.astype(jnp.float32)
    if pos is None:
        qk_in = x
    else:
        p = jnp.asarray(pos, jnp.float32)
        if p.ndim == 2:
            p = p[None]
        qk_in = x + jnp.broadcast_to(p, x.shape)

    def lin(t, w, b):
        return jnp.einsum("bli,io->blo", t, w.astype(jnp.float32),
                          precision=hp) + b.astype(jnp.float32)[0]

    q = lin(qk_in, params["wq"], params["bq"])
    k = lin(qk_in, params["wk"], params["bk"])
    v = lin(x, params["wv"], params["bv"])

    def split(t):  # (B, L, C) -> (B, H, L, d)
        return t.reshape(B, L, num_heads, d).transpose(0, 2, 1, 3)

    qh, kh, vh = split(q), split(k), split(v)
    s = jnp.einsum("bhqd,bhkd->bhqk", qh, kh, precision=hp) / jnp.sqrt(jnp.float32(d))
    pattn = jax.nn.softmax(s, axis=-1)
    o = jnp.einsum("bhqk,bhkd->bhqd", pattn, vh, precision=hp)
    o = o.transpose(0, 2, 1, 3).reshape(B, L, C)
    mha = lin(o, params["wo"], params["bo"])

    def ln(t, g, b_):
        mu = jnp.mean(t, axis=-1, keepdims=True)
        var = jnp.mean((t - mu) ** 2, axis=-1, keepdims=True)
        return (t - mu) / jnp.sqrt(var + LN_EPS) * g[0] + b_[0]

    h1 = ln(x + mha, params["ln1g"].astype(jnp.float32), params["ln1b"].astype(jnp.float32))
    ff = jax.nn.gelu(lin(h1, params["w1"], params["b1"]), approximate=False)
    ff = lin(ff, params["w2"], params["b2"])
    return ln(h1 + ff, params["ln2g"].astype(jnp.float32), params["ln2b"].astype(jnp.float32))


if __name__ == "__main__":
    B, L, C, CM, H = 2, 16, 32, 64, 4   # batch, seq, c1, cm, num_heads
    TQ = 8                              # 2 query tiles -> exercises K/V-resident path

    key = jax.random.PRNGKey(0)
    ks = jax.random.split(key, 20)

    def nrm(k, shape, s=0.1):
        return s * jax.random.normal(k, shape, dtype=jnp.float32)

    src = jax.random.normal(ks[0], (B, L, C), dtype=jnp.float32)
    pos = 0.1 * jax.random.normal(ks[1], (1, L, C), dtype=jnp.float32)  # batch-invariant

    params = dict(
        wq=nrm(ks[2], (C, C)),  bq=nrm(ks[3], (1, C)),
        wk=nrm(ks[4], (C, C)),  bk=nrm(ks[5], (1, C)),
        wv=nrm(ks[6], (C, C)),  bv=nrm(ks[7], (1, C)),
        wo=nrm(ks[8], (C, C)),  bo=nrm(ks[9], (1, C)),
        ln1g=jnp.ones((1, C), jnp.float32) + nrm(ks[10], (1, C), 0.05),
        ln1b=nrm(ks[11], (1, C), 0.05),
        w1=nrm(ks[12], (C, CM)), b1=nrm(ks[13], (1, CM)),
        w2=nrm(ks[14], (CM, C)), b2=nrm(ks[15], (1, C)),
        ln2g=jnp.ones((1, C), jnp.float32) + nrm(ks[16], (1, C), 0.05),
        ln2b=nrm(ks[17], (1, C), 0.05),
    )

    # bf16 MXU operands -> compare against the f32 reference with a bf16-level
    # tolerance (relative rounding ~2^-9 per operand).
    TOL = 3e-2

    out = jax.block_until_ready(
        transformer_encoder_layer(src, pos, params, num_heads=H, q_tile=TQ))
    ref = reference_encoder_layer(src, pos, params, num_heads=H)
    assert out.shape == (B, L, C), out.shape
    err = float(jnp.max(jnp.abs(out - ref)))
    assert jnp.allclose(out, ref, atol=TOL, rtol=TOL), ("with-pos", err)

    out_np = jax.block_until_ready(
        transformer_encoder_layer(src, None, params, num_heads=H, q_tile=TQ))
    ref_np = reference_encoder_layer(src, None, params, num_heads=H)
    err_np = float(jnp.max(jnp.abs(out_np - ref_np)))
    assert jnp.allclose(out_np, ref_np, atol=TOL, rtol=TOL), ("no-pos", err_np)

    print("KERNEL_OK")
</pallas_src>

<mosaic_0001>
module attributes {stable_mosaic.version = 11 : i64} {
  func.func @encoder_layer_kernel(%arg0: i32, %arg1: i32, %arg2: memref<1x16x32xf32, #tpu.memory_space<vmem>>, %arg3: memref<1x16x32xf32, #tpu.memory_space<vmem>>, %arg4: memref<32x32xbf16, #tpu.memory_space<vmem>>, %arg5: memref<1x32xf32, #tpu.memory_space<vmem>>, %arg6: memref<32x32xbf16, #tpu.memory_space<vmem>>, %arg7: memref<1x32xf32, #tpu.memory_space<vmem>>, %arg8: memref<32x32xbf16, #tpu.memory_space<vmem>>, %arg9: memref<1x32xf32, #tpu.memory_space<vmem>>, %arg10: memref<32x32xbf16, #tpu.memory_space<vmem>>, %arg11: memref<1x32xf32, #tpu.memory_space<vmem>>, %arg12: memref<1x32xf32, #tpu.memory_space<vmem>>, %arg13: memref<1x32xf32, #tpu.memory_space<vmem>>, %arg14: memref<32x64xbf16, #tpu.memory_space<vmem>>, %arg15: memref<1x64xf32, #tpu.memory_space<vmem>>, %arg16: memref<64x32xbf16, #tpu.memory_space<vmem>>, %arg17: memref<1x32xf32, #tpu.memory_space<vmem>>, %arg18: memref<1x32xf32, #tpu.memory_space<vmem>>, %arg19: memref<1x32xf32, #tpu.memory_space<vmem>>, %arg20: memref<1x8x32xf32, #tpu.memory_space<vmem>>, %arg21: memref<16x32xbf16, #tpu.memory_space<vmem>>, %arg22: memref<16x32xbf16, #tpu.memory_space<vmem>>, %arg23: memref<8x32xbf16, #tpu.memory_space<vmem>>) attributes {dimension_semantics = [#tpu.dimension_semantics<parallel>, #tpu.dimension_semantics<arbitrary>], iteration_bounds = array<i64: 2, 2>, scalar_prefetch = 0 : i64, scratch_operands = 3 : i64, tpu.core_type = #tpu.core_type<tc>, window_params = [{transform_indices = @transform_0, window_bounds = array<i64: 1, 16, 32>}, {pipeline_mode = #tpu.pipeline_mode<synchronous>, transform_indices = @transform_1, window_bounds = array<i64: 1, 16, 32>}, {pipeline_mode = #tpu.pipeline_mode<synchronous>, transform_indices = @transform_2, window_bounds = array<i64: 32, 32>}, {pipeline_mode = #tpu.pipeline_mode<synchronous>, transform_indices = @transform_3, window_bounds = array<i64: 1, 32>}, {pipeline_mode = #tpu.pipeline_mode<synchronous>, transform_indices = @transform_4, window_bounds = array<i64: 32, 32>}, {pipeline_mode = #tpu.pipeline_mode<synchronous>, transform_indices = @transform_5, window_bounds = array<i64: 1, 32>}, {pipeline_mode = #tpu.pipeline_mode<synchronous>, transform_indices = @transform_6, window_bounds = array<i64: 32, 32>}, {pipeline_mode = #tpu.pipeline_mode<synchronous>, transform_indices = @transform_7, window_bounds = array<i64: 1, 32>}, {pipeline_mode = #tpu.pipeline_mode<synchronous>, transform_indices = @transform_8, window_bounds = array<i64: 32, 32>}, {pipeline_mode = #tpu.pipeline_mode<synchronous>, transform_indices = @transform_9, window_bounds = array<i64: 1, 32>}, {pipeline_mode = #tpu.pipeline_mode<synchronous>, transform_indices = @transform_10, window_bounds = array<i64: 1, 32>}, {pipeline_mode = #tpu.pipeline_mode<synchronous>, transform_indices = @transform_11, window_bounds = array<i64: 1, 32>}, {pipeline_mode = #tpu.pipeline_mode<synchronous>, transform_indices = @transform_12, window_bounds = array<i64: 32, 64>}, {pipeline_mode = #tpu.pipeline_mode<synchronous>, transform_indices = @transform_13, window_bounds = array<i64: 1, 64>}, {pipeline_mode = #tpu.pipeline_mode<synchronous>, transform_indices = @transform_14, window_bounds = array<i64: 64, 32>}, {pipeline_mode = #tpu.pipeline_mode<synchronous>, transform_indices = @transform_15, window_bounds = array<i64: 1, 32>}, {pipeline_mode = #tpu.pipeline_mode<synchronous>, transform_indices = @transform_16, window_bounds = array<i64: 1, 32>}, {pipeline_mode = #tpu.pipeline_mode<synchronous>, transform_indices = @transform_17, window_bounds = array<i64: 1, 32>}, {transform_indices = @transform_18, window_bounds = array<i64: 1, 8, 32>}]} {
    %c0_i32 = arith.constant 0 : i32
    %0 = arith.cmpi eq, %arg1, %c0_i32 : i32
    %1 = arith.extui %0 : i1 to i32
    %c0_i32_0 = arith.constant 0 : i32
    %2 = arith.cmpi ne, %1, %c0_i32_0 : i32
    scf.if %2 {
      %c0_87 = arith.constant 0 : index
      %c0_88 = arith.constant 0 : index
      %c0_89 = arith.constant 0 : index
      %201 = vector.load %arg2[%c0_87, %c0_88, %c0_89] : memref<1x16x32xf32, #tpu.memory_space<vmem>>, vector<1x16x32xf32>
      %202 = vector.shape_cast %201 : vector<1x16x32xf32> to vector<16x32xf32>
      %c0_90 = arith.constant 0 : index
      %c0_91 = arith.constant 0 : index
      %c0_92 = arith.constant 0 : index
      %203 = vector.load %arg3[%c0_90, %c0_91, %c0_92] : memref<1x16x32xf32, #tpu.memory_space<vmem>>, vector<1x16x32xf32>
      %204 = vector.shape_cast %203 : vector<1x16x32xf32> to vector<16x32xf32>
      %205 = arith.addf %202, %204 : vector<16x32xf32>
      %206 = arith.truncf %205 : vector<16x32xf32> to vector<16x32xbf16>
      %c0_93 = arith.constant 0 : index
      %c0_94 = arith.constant 0 : index
      %207 = vector.load %arg6[%c0_93, %c0_94] : memref<32x32xbf16, #tpu.memory_space<vmem>>, vector<32x32xbf16>
      %cst_95 = arith.constant dense<0.000000e+00> : vector<16x32xf32>
      %208 = tpu.matmul %206, %207, %cst_95 {dimension_numbers = #tpu.dot_dimension_numbers<[1], [0], [0], [1], [0, 0, 1, 1], [], []>} : vector<16x32xbf16>, vector<32x32xbf16>, vector<16x32xf32> -> vector<16x32xf32>
      %c0_96 = arith.constant 0 : index
      %c0_97 = arith.constant 0 : index
      %209 = vector.load %arg7[%c0_96, %c0_97] : memref<1x32xf32, #tpu.memory_space<vmem>>, vector<1x32xf32>
      %210 = vector.broadcast %209 : vector<1x32xf32> to vector<16x32xf32>
      %211 = arith.addf %208, %210 : vector<16x32xf32>
      %212 = arith.truncf %202 : vector<16x32xf32> to vector<16x32xbf16>
      %c0_98 = arith.constant 0 : index
      %c0_99 = arith.constant 0 : index
      %213 = vector.load %arg8[%c0_98, %c0_99] : memref<32x32xbf16, #tpu.memory_space<vmem>>, vector<32x32xbf16>
      %cst_100 = arith.constant dense<0.000000e+00> : vector<16x32xf32>
      %214 = tpu.matmul %212, %213, %cst_100 {dimension_numbers = #tpu.dot_dimension_numbers<[1], [0], [0], [1], [0, 0, 1, 1], [], []>} : vector<16x32xbf16>, vector<32x32xbf16>, vector<16x32xf32> -> vector<16x32xf32>
      %c0_101 = arith.constant 0 : index
      %c0_102 = arith.constant 0 : index
      %215 = vector.load %arg9[%c0_101, %c0_102] : memref<1x32xf32, #tpu.memory_space<vmem>>, vector<1x32xf32>
      %216 = vector.broadcast %215 : vector<1x32xf32> to vector<16x32xf32>
      %217 = arith.addf %214, %216 : vector<16x32xf32>
      %218 = arith.truncf %211 : vector<16x32xf32> to vector<16x32xbf16>
      %c0_103 = arith.constant 0 : index
      %c0_104 = arith.constant 0 : index
      %219 = vector.load %arg21[%c0_103, %c0_104] : memref<16x32xbf16, #tpu.memory_space<vmem>>, vector<16x32xbf16>
      tpu.vector_store %arg21[%c0_103, %c0_104], %218 {strides = array<i32>} : memref<16x32xbf16, #tpu.memory_space<vmem>>, vector<16x32xbf16>,
      %220 = arith.truncf %217 : vector<16x32xf32> to vector<16x32xbf16>
      %c0_105 = arith.constant 0 : index
      %c0_106 = arith.constant 0 : index
      %221 = vector.load %arg22[%c0_105, %c0_106] : memref<16x32xbf16, #tpu.memory_space<vmem>>, vector<16x32xbf16>
      tpu.vector_store %arg22[%c0_105, %c0_106], %220 {strides = array<i32>} : memref<16x32xbf16, #tpu.memory_space<vmem>>, vector<16x32xbf16>,
    } else {
    }
    %c8_i32 = arith.constant 8 : i32
    %3 = arith.muli %arg1, %c8_i32 : i32
    %4 = tpu.assume_multiple %3, 8 : i32
    %c0 = arith.constant 0 : index
    %5 = arith.index_cast %4 : i32 to index
    %c0_1 = arith.constant 0 : index
    %6 = vector.load %arg2[%c0, %5, %c0_1] : memref<1x16x32xf32, #tpu.memory_space<vmem>>, vector<1x8x32xf32>
    %7 = vector.shape_cast %6 : vector<1x8x32xf32> to vector<8x32xf32>
    %c0_2 = arith.constant 0 : index
    %8 = arith.index_cast %4 : i32 to index
    %c0_3 = arith.constant 0 : index
    %9 = vector.load %arg3[%c0_2, %8, %c0_3] : memref<1x16x32xf32, #tpu.memory_space<vmem>>, vector<1x8x32xf32>
    %10 = vector.shape_cast %9 : vector<1x8x32xf32> to vector<8x32xf32>
    %11 = arith.addf %7, %10 : vector<8x32xf32>
    %12 = arith.truncf %11 : vector<8x32xf32> to vector<8x32xbf16>
    %c0_4 = arith.constant 0 : index
    %c0_5 = arith.constant 0 : index
    %13 = vector.load %arg4[%c0_4, %c0_5] : memref<32x32xbf16, #tpu.memory_space<vmem>>, vector<32x32xbf16>
    %cst = arith.constant dense<0.000000e+00> : vector<8x32xf32>
    %14 = tpu.matmul %12, %13, %cst {dimension_numbers = #tpu.dot_dimension_numbers<[1], [0], [0], [1], [0, 0, 1, 1], [], []>} : vector<8x32xbf16>, vector<32x32xbf16>, vector<8x32xf32> -> vector<8x32xf32>
    %c0_6 = arith.constant 0 : index
    %c0_7 = arith.constant 0 : index
    %15 = vector.load %arg5[%c0_6, %c0_7] : memref<1x32xf32, #tpu.memory_space<vmem>>, vector<1x32xf32>
    %16 = vector.broadcast %15 : vector<1x32xf32> to vector<8x32xf32>
    %17 = arith.addf %14, %16 : vector<8x32xf32>
    %18 = arith.truncf %17 : vector<8x32xf32> to vector<8x32xbf16>
    %c0_8 = arith.constant 0 : index
    %c0_9 = arith.constant 0 : index
    %19 = vector.load %arg21[%c0_8, %c0_9] : memref<16x32xbf16, #tpu.memory_space<vmem>>, vector<16x32xbf16>
    %c0_10 = arith.constant 0 : index
    %c0_11 = arith.constant 0 : index
    %20 = vector.load %arg22[%c0_10, %c0_11] : memref<16x32xbf16, #tpu.memory_space<vmem>>, vector<16x32xbf16>
    %21 = vector.extract_strided_slice %18 {offsets = [0, 0], sizes = [8, 8], strides = [1, 1]} : vector<8x32xbf16> to vector<8x8xbf16>
    %22 = vector.extract_strided_slice %19 {offsets = [0, 0], sizes = [16, 8], strides = [1, 1]} : vector<16x32xbf16> to vector<16x8xbf16>
    %cst_12 = arith.constant dense<0.000000e+00> : vector<8x16xf32>
    %23 = tpu.matmul %21, %22, %cst_12 {dimension_numbers = #tpu.dot_dimension_numbers<[1], [1], [0], [0], [0, 0, 1, 0], [], []>} : vector<8x8xbf16>, vector<16x8xbf16>, vector<8x16xf32> -> vector<8x16xf32>
    %cst_13 = arith.constant dense<0xFF800000> : vector<8xf32>
    %24 = vector.multi_reduction <maximumf>, %23, %cst_13 [1] : vector<8x16xf32> to vector<8xf32>
    %25 = vector.shape_cast %24 : vector<8xf32> to vector<8x1xf32>
    %26 = vector.broadcast %25 : vector<8x1xf32> to vector<8x16xf32>
    %27 = arith.subf %23, %26 : vector<8x16xf32>
    %28 = math.exp %27 : vector<8x16xf32>
    %cst_14 = arith.constant dense<0.000000e+00> : vector<8xf32>
    %29 = vector.multi_reduction <add>, %28, %cst_14 [1] : vector<8x16xf32> to vector<8xf32>
    %30 = vector.shape_cast %29 : vector<8xf32> to vector<8x1xf32>
    %31 = tpu.reciprocal %30 {approx = true} : vector<8x1xf32> -> vector<8x1xf32>
    %32 = arith.truncf %28 : vector<8x16xf32> to vector<8x16xbf16>
    %33 = vector.extract_strided_slice %20 {offsets = [0, 0], sizes = [16, 8], strides = [1, 1]} : vector<16x32xbf16> to vector<16x8xbf16>
    %cst_15 = arith.constant dense<0.000000e+00> : vector<8x8xf32>
    %34 = tpu.matmul %32, %33, %cst_15 {dimension_numbers = #tpu.dot_dimension_numbers<[1], [0], [0], [1], [0, 0, 1, 1], [], []>} : vector<8x16xbf16>, vector<16x8xbf16>, vector<8x8xf32> -> vector<8x8xf32>
    %35 = vector.broadcast %31 : vector<8x1xf32> to vector<8x8xf32>
    %36 = arith.mulf %34, %35 : vector<8x8xf32>
    %37 = arith.truncf %36 : vector<8x8xf32> to vector<8x8xbf16>
    %c0_16 = arith.constant 0 : index
    %c0_17 = arith.constant 0 : index
    %38 = vector.load %arg23[%c0_16, %c0_17] : memref<8x32xbf16, #tpu.memory_space<vmem>>, vector<8x8xbf16>
    tpu.vector_store %arg23[%c0_16, %c0_17], %37 {strides = array<i32>} : memref<8x32xbf16, #tpu.memory_space<vmem>>, vector<8x8xbf16>,
    %39 = vector.extract_strided_slice %18 {offsets = [0, 8], sizes = [8, 8], strides = [1, 1]} : vector<8x32xbf16> to vector<8x8xbf16>
    %40 = vector.extract_strided_slice %19 {offsets = [0, 8], sizes = [16, 8], strides = [1, 1]} : vector<16x32xbf16> to vector<16x8xbf16>
    %cst_18 = arith.constant dense<0.000000e+00> : vector<8x16xf32>
    %41 = tpu.matmul %39, %40, %cst_18 {dimension_numbers = #tpu.dot_dimension_numbers<[1], [1], [0], [0], [0, 0, 1, 0], [], []>} : vector<8x8xbf16>, vector<16x8xbf16>, vector<8x16xf32> -> vector<8x16xf32>
    %cst_19 = arith.constant dense<0xFF800000> : vector<8xf32>
    %42 = vector.multi_reduction <maximumf>, %41, %cst_19 [1] : vector<8x16xf32> to vector<8xf32>
    %43 = vector.shape_cast %42 : vector<8xf32> to vector<8x1xf32>
    %44 = vector.broadcast %43 : vector<8x1xf32> to vector<8x16xf32>
    %45 = arith.subf %41, %44 : vector<8x16xf32>
    %46 = math.exp %45 : vector<8x16xf32>
    %cst_20 = arith.constant dense<0.000000e+00> : vector<8xf32>
    %47 = vector.multi_reduction <add>, %46, %cst_20 [1] : vector<8x16xf32> to vector<8xf32>
    %48 = vector.shape_cast %47 : vector<8xf32> to vector<8x1xf32>
    %49 = tpu.reciprocal %48 {approx = true} : vector<8x1xf32> -> vector<8x1xf32>
    %50 = arith.truncf %46 : vector<8x16xf32> to vector<8x16xbf16>
    %51 = vector.extract_strided_slice %20 {offsets = [0, 8], sizes = [16, 8], strides = [1, 1]} : vector<16x32xbf16> to vector<16x8xbf16>
    %cst_21 = arith.constant dense<0.000000e+00> : vector<8x8xf32>
    %52 = tpu.matmul %50, %51, %cst_21 {dimension_numbers = #tpu.dot_dimension_numbers<[1], [0], [0], [1], [0, 0, 1, 1], [], []>} : vector<8x16xbf16>, vector<16x8xbf16>, vector<8x8xf32> -> vector<8x8xf32>
    %53 = vector.broadcast %49 : vector<8x1xf32> to vector<8x8xf32>
    %54 = arith.mulf %52, %53 : vector<8x8xf32>
    %55 = arith.truncf %54 : vector<8x8xf32> to vector<8x8xbf16>
    %c0_22 = arith.constant 0 : index
    %c8 = arith.constant 8 : index
    %56 = vector.load %arg23[%c0_22, %c8] : memref<8x32xbf16, #tpu.memory_space<vmem>>, vector<8x8xbf16>
    tpu.vector_store %arg23[%c0_22, %c8], %55 {strides = array<i32>} : memref<8x32xbf16, #tpu.memory_space<vmem>>, vector<8x8xbf16>,
    %57 = vector.extract_strided_slice %18 {offsets = [0, 16], sizes = [8, 8], strides = [1, 1]} : vector<8x32xbf16> to vector<8x8xbf16>
    %58 = vector.extract_strided_slice %19 {offsets = [0, 16], sizes = [16, 8], strides = [1, 1]} : vector<16x32xbf16> to vector<16x8xbf16>
    %cst_23 = arith.constant dense<0.000000e+00> : vector<8x16xf32>
    %59 = tpu.matmul %57, %58, %cst_23 {dimension_numbers = #tpu.dot_dimension_numbers<[1], [1], [0], [0], [0, 0, 1, 0], [], []>} : vector<8x8xbf16>, vector<16x8xbf16>, vector<8x16xf32> -> vector<8x16xf32>
    %cst_24 = arith.constant dense<0xFF800000> : vector<8xf32>
    %60 = vector.multi_reduction <maximumf>, %59, %cst_24 [1] : vector<8x16xf32> to vector<8xf32>
    %61 = vector.shape_cast %60 : vector<8xf32> to vector<8x1xf32>
    %62 = vector.broadcast %61 : vector<8x1xf32> to vector<8x16xf32>
    %63 = arith.subf %59, %62 : vector<8x16xf32>
    %64 = math.exp %63 : vector<8x16xf32>
    %cst_25 = arith.constant dense<0.000000e+00> : vector<8xf32>
    %65 = vector.multi_reduction <add>, %64, %cst_25 [1] : vector<8x16xf32> to vector<8xf32>
    %66 = vector.shape_cast %65 : vector<8xf32> to vector<8x1xf32>
    %67 = tpu.reciprocal %66 {approx = true} : vector<8x1xf32> -> vector<8x1xf32>
    %68 = arith.truncf %64 : vector<8x16xf32> to vector<8x16xbf16>
    %69 = vector.extract_strided_slice %20 {offsets = [0, 16], sizes = [16, 8], strides = [1, 1]} : vector<16x32xbf16> to vector<16x8xbf16>
    %cst_26 = arith.constant dense<0.000000e+00> : vector<8x8xf32>
    %70 = tpu.matmul %68, %69, %cst_26 {dimension_numbers = #tpu.dot_dimension_numbers<[1], [0], [0], [1], [0, 0, 1, 1], [], []>} : vector<8x16xbf16>, vector<16x8xbf16>, vector<8x8xf32> -> vector<8x8xf32>
    %71 = vector.broadcast %67 : vector<8x1xf32> to vector<8x8xf32>
    %72 = arith.mulf %70, %71 : vector<8x8xf32>
    %73 = arith.truncf %72 : vector<8x8xf32> to vector<8x8xbf16>
    %c0_27 = arith.constant 0 : index
    %c16 = arith.constant 16 : index
    %74 = vector.load %arg23[%c0_27, %c16] : memref<8x32xbf16, #tpu.memory_space<vmem>>, vector<8x8xbf16>
    tpu.vector_store %arg23[%c0_27, %c16], %73 {strides = array<i32>} : memref<8x32xbf16, #tpu.memory_space<vmem>>, vector<8x8xbf16>,
    %75 = vector.extract_strided_slice %18 {offsets = [0, 24], sizes = [8, 8], strides = [1, 1]} : vector<8x32xbf16> to vector<8x8xbf16>
    %76 = vector.extract_strided_slice %19 {offsets = [0, 24], sizes = [16, 8], strides = [1, 1]} : vector<16x32xbf16> to vector<16x8xbf16>
    %cst_28 = arith.constant dense<0.000000e+00> : vector<8x16xf32>
    %77 = tpu.matmul %75, %76, %cst_28 {dimension_numbers = #tpu.dot_dimension_numbers<[1], [1], [0], [0], [0, 0, 1, 0], [], []>} : vector<8x8xbf16>, vector<16x8xbf16>, vector<8x16xf32> -> vector<8x16xf32>
    %cst_29 = arith.constant dense<0xFF800000> : vector<8xf32>
    %78 = vector.multi_reduction <maximumf>, %77, %cst_29 [1] : vector<8x16xf32> to vector<8xf32>
    %79 = vector.shape_cast %78 : vector<8xf32> to vector<8x1xf32>
    %80 = vector.broadcast %79 : vector<8x1xf32> to vector<8x16xf32>
    %81 = arith.subf %77, %80 : vector<8x16xf32>
    %82 = math.exp %81 : vector<8x16xf32>
    %cst_30 = arith.constant dense<0.000000e+00> : vector<8xf32>
    %83 = vector.multi_reduction <add>, %82, %cst_30 [1] : vector<8x16xf32> to vector<8xf32>
    %84 = vector.shape_cast %83 : vector<8xf32> to vector<8x1xf32>
    %85 = tpu.reciprocal %84 {approx = true} : vector<8x1xf32> -> vector<8x1xf32>
    %86 = arith.truncf %82 : vector<8x16xf32> to vector<8x16xbf16>
    %87 = vector.extract_strided_slice %20 {offsets = [0, 24], sizes = [16, 8], strides = [1, 1]} : vector<16x32xbf16> to vector<16x8xbf16>
    %cst_31 = arith.constant dense<0.000000e+00> : vector<8x8xf32>
    %88 = tpu.matmul %86, %87, %cst_31 {dimension_numbers = #tpu.dot_dimension_numbers<[1], [0], [0], [1], [0, 0, 1, 1], [], []>} : vector<8x16xbf16>, vector<16x8xbf16>, vector<8x8xf32> -> vector<8x8xf32>
    %89 = vector.broadcast %85 : vector<8x1xf32> to vector<8x8xf32>
    %90 = arith.mulf %88, %89 : vector<8x8xf32>
    %91 = arith.truncf %90 : vector<8x8xf32> to vector<8x8xbf16>
    %c0_32 = arith.constant 0 : index
    %c24 = arith.constant 24 : index
    %92 = vector.load %arg23[%c0_32, %c24] : memref<8x32xbf16, #tpu.memory_space<vmem>>, vector<8x8xbf16>
    tpu.vector_store %arg23[%c0_32, %c24], %91 {strides = array<i32>} : memref<8x32xbf16, #tpu.memory_space<vmem>>, vector<8x8xbf16>,
    %c0_33 = arith.constant 0 : index
    %c0_34 = arith.constant 0 : index
    %93 = vector.load %arg23[%c0_33, %c0_34] : memref<8x32xbf16, #tpu.memory_space<vmem>>, vector<8x32xbf16>
    %c0_35 = arith.constant 0 : index
    %c0_36 = arith.constant 0 : index
    %94 = vector.load %arg10[%c0_35, %c0_36] : memref<32x32xbf16, #tpu.memory_space<vmem>>, vector<32x32xbf16>
    %cst_37 = arith.constant dense<0.000000e+00> : vector<8x32xf32>
    %95 = tpu.matmul %93, %94, %cst_37 {dimension_numbers = #tpu.dot_dimension_numbers<[1], [0], [0], [1], [0, 0, 1, 1], [], []>} : vector<8x32xbf16>, vector<32x32xbf16>, vector<8x32xf32> -> vector<8x32xf32>
    %c0_38 = arith.constant 0 : index
    %c0_39 = arith.constant 0 : index
    %96 = vector.load %arg11[%c0_38, %c0_39] : memref<1x32xf32, #tpu.memory_space<vmem>>, vector<1x32xf32>
    %97 = vector.broadcast %96 : vector<1x32xf32> to vector<8x32xf32>
    %98 = arith.addf %95, %97 : vector<8x32xf32>
    %99 = arith.addf %7, %98 : vector<8x32xf32>
    %c0_40 = arith.constant 0 : index
    %c0_41 = arith.constant 0 : index
    %100 = vector.load %arg12[%c0_40, %c0_41] : memref<1x32xf32, #tpu.memory_space<vmem>>, vector<1x32xf32>
    %c0_42 = arith.constant 0 : index
    %c0_43 = arith.constant 0 : index
    %101 = vector.load %arg13[%c0_42, %c0_43] : memref<1x32xf32, #tpu.memory_space<vmem>>, vector<1x32xf32>
    %cst_44 = arith.constant dense<0.000000e+00> : vector<8xf32>
    %102 = vector.multi_reduction <add>, %99, %cst_44 [1] : vector<8x32xf32> to vector<8xf32>
    %103 = vector.shape_cast %102 : vector<8xf32> to vector<8x1xf32>
    %cst_45 = arith.constant 3.200000e+01 : f32
    %104 = vector.broadcast %cst_45 : f32 to vector<8x1xf32>
    %105 = arith.divf %103, %104 : vector<8x1xf32>
    %106 = vector.broadcast %105 : vector<8x1xf32> to vector<8x32xf32>
    %107 = arith.subf %99, %106 : vector<8x32xf32>
    %108 = arith.mulf %107, %107 : vector<8x32xf32>
    %cst_46 = arith.constant dense<0.000000e+00> : vector<8xf32>
    %109 = vector.multi_reduction <add>, %108, %cst_46 [1] : vector<8x32xf32> to vector<8xf32>
    %110 = vector.shape_cast %109 : vector<8xf32> to vector<8x1xf32>
    %cst_47 = arith.constant 3.200000e+01 : f32
    %111 = vector.broadcast %cst_47 : f32 to vector<8x1xf32>
    %112 = arith.divf %110, %111 : vector<8x1xf32>
    %cst_48 = arith.constant 9.99999974E-6 : f32
    %113 = vector.broadcast %cst_48 : f32 to vector<8x1xf32>
    %114 = arith.addf %112, %113 : vector<8x1xf32>
    %115 = math.rsqrt %114 : vector<8x1xf32>
    %116 = vector.broadcast %115 : vector<8x1xf32> to vector<8x32xf32>
    %117 = arith.mulf %107, %116 : vector<8x32xf32>
    %118 = vector.broadcast %100 : vector<1x32xf32> to vector<8x32xf32>
    %119 = arith.mulf %117, %118 : vector<8x32xf32>
    %120 = vector.broadcast %101 : vector<1x32xf32> to vector<8x32xf32>
    %121 = arith.addf %119, %120 : vector<8x32xf32>
    %122 = arith.truncf %121 : vector<8x32xf32> to vector<8x32xbf16>
    %c0_49 = arith.constant 0 : index
    %c0_50 = arith.constant 0 : index
    %123 = vector.load %arg14[%c0_49, %c0_50] : memref<32x64xbf16, #tpu.memory_space<vmem>>, vector<32x64xbf16>
    %cst_51 = arith.constant dense<0.000000e+00> : vector<8x64xf32>
    %124 = tpu.matmul %122, %123, %cst_51 {dimension_numbers = #tpu.dot_dimension_numbers<[1], [0], [0], [1], [0, 0, 1, 1], [], []>} : vector<8x32xbf16>, vector<32x64xbf16>, vector<8x64xf32> -> vector<8x64xf32>
    %c0_52 = arith.constant 0 : index
    %c0_53 = arith.constant 0 : index
    %125 = vector.load %arg15[%c0_52, %c0_53] : memref<1x64xf32, #tpu.memory_space<vmem>>, vector<1x64xf32>
    %126 = vector.broadcast %125 : vector<1x64xf32> to vector<8x64xf32>
    %127 = arith.addf %124, %126 : vector<8x64xf32>
    %cst_54 = arith.constant 5.000000e-01 : f32
    %128 = vector.broadcast %cst_54 : f32 to vector<8x64xf32>
    %129 = arith.mulf %128, %127 : vector<8x64xf32>
    %cst_55 = arith.constant 0.707106769 : f32
    %130 = vector.broadcast %cst_55 : f32 to vector<8x64xf32>
    %131 = arith.mulf %127, %130 : vector<8x64xf32>
    %cst_56 = arith.constant 0.000000e+00 : f32
    %132 = vector.broadcast %cst_56 : f32 to vector<8x64xf32>
    %133 = arith.cmpf oge, %131, %132 : vector<8x64xf32>
    %cst_57 = arith.constant 1.000000e+00 : f32
    %cst_58 = arith.constant -1.000000e+00 : f32
    %134 = vector.broadcast %cst_57 : f32 to vector<8x64xf32>
    %135 = vector.broadcast %cst_58 : f32 to vector<8x64xf32>
    %136 = arith.select %133, %134, %135 : vector<8x64xi1>, vector<8x64xf32>
    %137 = math.absf %131 : vector<8x64xf32>
    %cst_59 = arith.constant 0.327591091 : f32
    %138 = vector.broadcast %cst_59 : f32 to vector<8x64xf32>
    %139 = arith.mulf %138, %137 : vector<8x64xf32>
    %cst_60 = arith.constant 1.000000e+00 : f32
    %140 = vector.broadcast %cst_60 : f32 to vector<8x64xf32>
    %141 = arith.addf %140, %139 : vector<8x64xf32>
    %cst_61 = arith.constant 1.000000e+00 : f32
    %142 = vector.broadcast %cst_61 : f32 to vector<8x64xf32>
    %143 = arith.divf %142, %141 : vector<8x64xf32>
    %cst_62 = arith.constant 1.06140542 : f32
    %144 = vector.broadcast %cst_62 : f32 to vector<8x64xf32>
    %145 = arith.mulf %144, %143 : vector<8x64xf32>
    %cst_63 = arith.constant -1.45315206 : f32
    %146 = vector.broadcast %cst_63 : f32 to vector<8x64xf32>
    %147 = arith.addf %145, %146 : vector<8x64xf32>
    %148 = arith.mulf %147, %143 : vector<8x64xf32>
    %cst_64 = arith.constant 1.42141378 : f32
    %149 = vector.broadcast %cst_64 : f32 to vector<8x64xf32>
    %150 = arith.addf %148, %149 : vector<8x64xf32>
    %151 = arith.mulf %150, %143 : vector<8x64xf32>
    %cst_65 = arith.constant -0.284496725 : f32
    %152 = vector.broadcast %cst_65 : f32 to vector<8x64xf32>
    %153 = arith.addf %151, %152 : vector<8x64xf32>
    %154 = arith.mulf %153, %143 : vector<8x64xf32>
    %cst_66 = arith.constant 0.254829586 : f32
    %155 = vector.broadcast %cst_66 : f32 to vector<8x64xf32>
    %156 = arith.addf %154, %155 : vector<8x64xf32>
    %157 = arith.mulf %156, %143 : vector<8x64xf32>
    %cst_67 = arith.constant 0.000000e+00 : f32
    %158 = vector.broadcast %cst_67 : f32 to vector<8x64xf32>
    %159 = arith.subf %158, %137 : vector<8x64xf32>
    %160 = arith.mulf %159, %137 : vector<8x64xf32>
    %161 = math.exp %160 : vector<8x64xf32>
    %162 = arith.mulf %157, %161 : vector<8x64xf32>
    %cst_68 = arith.constant 1.000000e+00 : f32
    %163 = vector.broadcast %cst_68 : f32 to vector<8x64xf32>
    %164 = arith.subf %163, %162 : vector<8x64xf32>
    %165 = arith.mulf %136, %164 : vector<8x64xf32>
    %cst_69 = arith.constant 1.000000e+00 : f32
    %166 = vector.broadcast %cst_69 : f32 to vector<8x64xf32>
    %167 = arith.addf %166, %165 : vector<8x64xf32>
    %168 = arith.mulf %129, %167 : vector<8x64xf32>
    %169 = arith.truncf %168 : vector<8x64xf32> to vector<8x64xbf16>
    %c0_70 = arith.constant 0 : index
    %c0_71 = arith.constant 0 : index
    %170 = vector.load %arg16[%c0_70, %c0_71] : memref<64x32xbf16, #tpu.memory_space<vmem>>, vector<64x32xbf16>
    %cst_72 = arith.constant dense<0.000000e+00> : vector<8x32xf32>
    %171 = tpu.matmul %169, %170, %cst_72 {dimension_numbers = #tpu.dot_dimension_numbers<[1], [0], [0], [1], [0, 0, 1, 1], [], []>} : vector<8x64xbf16>, vector<64x32xbf16>, vector<8x32xf32> -> vector<8x32xf32>
    %c0_73 = arith.constant 0 : index
    %c0_74 = arith.constant 0 : index
    %172 = vector.load %arg17[%c0_73, %c0_74] : memref<1x32xf32, #tpu.memory_space<vmem>>, vector<1x32xf32>
    %173 = vector.broadcast %172 : vector<1x32xf32> to vector<8x32xf32>
    %174 = arith.addf %171, %173 : vector<8x32xf32>
    %175 = arith.addf %121, %174 : vector<8x32xf32>
    %c0_75 = arith.constant 0 : index
    %c0_76 = arith.constant 0 : index
    %176 = vector.load %arg18[%c0_75, %c0_76] : memref<1x32xf32, #tpu.memory_space<vmem>>, vector<1x32xf32>
    %c0_77 = arith.constant 0 : index
    %c0_78 = arith.constant 0 : index
    %177 = vector.load %arg19[%c0_77, %c0_78] : memref<1x32xf32, #tpu.memory_space<vmem>>, vector<1x32xf32>
    %cst_79 = arith.constant dense<0.000000e+00> : vector<8xf32>
    %178 = vector.multi_reduction <add>, %175, %cst_79 [1] : vector<8x32xf32> to vector<8xf32>
    %179 = vector.shape_cast %178 : vector<8xf32> to vector<8x1xf32>
    %cst_80 = arith.constant 3.200000e+01 : f32
    %180 = vector.broadcast %cst_80 : f32 to vector<8x1xf32>
    %181 = arith.divf %179, %180 : vector<8x1xf32>
    %182 = vector.broadcast %181 : vector<8x1xf32> to vector<8x32xf32>
    %183 = arith.subf %175, %182 : vector<8x32xf32>
    %184 = arith.mulf %183, %183 : vector<8x32xf32>
    %cst_81 = arith.constant dense<0.000000e+00> : vector<8xf32>
    %185 = vector.multi_reduction <add>, %184, %cst_81 [1] : vector<8x32xf32> to vector<8xf32>
    %186 = vector.shape_cast %185 : vector<8xf32> to vector<8x1xf32>
    %cst_82 = arith.constant 3.200000e+01 : f32
    %187 = vector.broadcast %cst_82 : f32 to vector<8x1xf32>
    %188 = arith.divf %186, %187 : vector<8x1xf32>
    %cst_83 = arith.constant 9.99999974E-6 : f32
    %189 = vector.broadcast %cst_83 : f32 to vector<8x1xf32>
    %190 = arith.addf %188, %189 : vector<8x1xf32>
    %191 = math.rsqrt %190 : vector<8x1xf32>
    %192 = vector.broadcast %191 : vector<8x1xf32> to vector<8x32xf32>
    %193 = arith.mulf %183, %192 : vector<8x32xf32>
    %194 = vector.broadcast %176 : vector<1x32xf32> to vector<8x32xf32>
    %195 = arith.mulf %193, %194 : vector<8x32xf32>
    %196 = vector.broadcast %177 : vector<1x32xf32> to vector<8x32xf32>
    %197 = arith.addf %195, %196 : vector<8x32xf32>
    %c0_84 = arith.constant 0 : index
    %c0_85 = arith.constant 0 : index
    %c0_86 = arith.constant 0 : index
    %198 = vector.load %arg20[%c0_84, %c0_85, %c0_86] : memref<1x8x32xf32, #tpu.memory_space<vmem>>, vector<1x8x32xf32>
    %199 = vector.shape_cast %198 : vector<1x8x32xf32> to vector<8x32xf32>
    %200 = vector.shape_cast %197 : vector<8x32xf32> to vector<1x8x32xf32>
    tpu.vector_store %arg20[%c0_84, %c0_85, %c0_86], %200 {strides = array<i32>} : memref<1x8x32xf32, #tpu.memory_space<vmem>>, vector<1x8x32xf32>,
    return
  }
  func.func @transform_0(%arg0: i32, %arg1: i32) -> (i32, i32, i32) {
    %c0_i32 = arith.constant 0 : i32
    %c0_i32_0 = arith.constant 0 : i32
    %c0_i32_1 = arith.constant 0 : i32
    return %arg0, %c0_i32, %c0_i32_0 : i32, i32, i32
  }
  func.func @transform_1(%arg0: i32, %arg1: i32) -> (i32, i32, i32) {
    %c0_i32 = arith.constant 0 : i32
    %c0_i32_0 = arith.constant 0 : i32
    %c0_i32_1 = arith.constant 0 : i32
    %c0_i32_2 = arith.constant 0 : i32
    return %c0_i32, %c0_i32_0, %c0_i32_1 : i32, i32, i32
  }
  func.func @transform_2(%arg0: i32, %arg1: i32) -> (i32, i32) {
    %c0_i32 = arith.constant 0 : i32
    %c0_i32_0 = arith.constant 0 : i32
    %c0_i32_1 = arith.constant 0 : i32
    return %c0_i32, %c0_i32_0 : i32, i32
  }
  func.func @transform_3(%arg0: i32, %arg1: i32) -> (i32, i32) {
    %c0_i32 = arith.constant 0 : i32
    %c0_i32_0 = arith.constant 0 : i32
    %c0_i32_1 = arith.constant 0 : i32
    return %c0_i32, %c0_i32_0 : i32, i32
  }
  func.func @transform_4(%arg0: i32, %arg1: i32) -> (i32, i32) {
    %c0_i32 = arith.constant 0 : i32
    %c0_i32_0 = arith.constant 0 : i32
    %c0_i32_1 = arith.constant 0 : i32
    return %c0_i32, %c0_i32_0 : i32, i32
  }
  func.func @transform_5(%arg0: i32, %arg1: i32) -> (i32, i32) {
    %c0_i32 = arith.constant 0 : i32
    %c0_i32_0 = arith.constant 0 : i32
    %c0_i32_1 = arith.constant 0 : i32
    return %c0_i32, %c0_i32_0 : i32, i32
  }
  func.func @transform_6(%arg0: i32, %arg1: i32) -> (i32, i32) {
    %c0_i32 = arith.constant 0 : i32
    %c0_i32_0 = arith.constant 0 : i32
    %c0_i32_1 = arith.constant 0 : i32
    return %c0_i32, %c0_i32_0 : i32, i32
  }
  func.func @transform_7(%arg0: i32, %arg1: i32) -> (i32, i32) {
    %c0_i32 = arith.constant 0 : i32
    %c0_i32_0 = arith.constant 0 : i32
    %c0_i32_1 = arith.constant 0 : i32
    return %c0_i32, %c0_i32_0 : i32, i32
  }
  func.func @transform_8(%arg0: i32, %arg1: i32) -> (i32, i32) {
    %c0_i32 = arith.constant 0 : i32
    %c0_i32_0 = arith.constant 0 : i32
    %c0_i32_1 = arith.constant 0 : i32
    return %c0_i32, %c0_i32_0 : i32, i32
  }
  func.func @transform_9(%arg0: i32, %arg1: i32) -> (i32, i32) {
    %c0_i32 = arith.constant 0 : i32
    %c0_i32_0 = arith.constant 0 : i32
    %c0_i32_1 = arith.constant 0 : i32
    return %c0_i32, %c0_i32_0 : i32, i32
  }
  func.func @transform_10(%arg0: i32, %arg1: i32) -> (i32, i32) {
    %c0_i32 = arith.constant 0 : i32
    %c0_i32_0 = arith.constant 0 : i32
    %c0_i32_1 = arith.constant 0 : i32
    return %c0_i32, %c0_i32_0 : i32, i32
  }
  func.func @transform_11(%arg0: i32, %arg1: i32) -> (i32, i32) {
    %c0_i32 = arith.constant 0 : i32
    %c0_i32_0 = arith.constant 0 : i32
    %c0_i32_1 = arith.constant 0 : i32
    return %c0_i32, %c0_i32_0 : i32, i32
  }
  func.func @transform_12(%arg0: i32, %arg1: i32) -> (i32, i32) {
    %c0_i32 = arith.constant 0 : i32
    %c0_i32_0 = arith.constant 0 : i32
    %c0_i32_1 = arith.constant 0 : i32
    return %c0_i32, %c0_i32_0 : i32, i32
  }
  func.func @transform_13(%arg0: i32, %arg1: i32) -> (i32, i32) {
    %c0_i32 = arith.constant 0 : i32
    %c0_i32_0 = arith.constant 0 : i32
    %c0_i32_1 = arith.constant 0 : i32
    return %c0_i32, %c0_i32_0 : i32, i32
  }
  func.func @transform_14(%arg0: i32, %arg1: i32) -> (i32, i32) {
    %c0_i32 = arith.constant 0 : i32
    %c0_i32_0 = arith.constant 0 : i32
    %c0_i32_1 = arith.constant 0 : i32
    return %c0_i32, %c0_i32_0 : i32, i32
  }
  func.func @transform_15(%arg0: i32, %arg1: i32) -> (i32, i32) {
    %c0_i32 = arith.constant 0 : i32
    %c0_i32_0 = arith.constant 0 : i32
    %c0_i32_1 = arith.constant 0 : i32
    return %c0_i32, %c0_i32_0 : i32, i32
  }
  func.func @transform_16(%arg0: i32, %arg1: i32) -> (i32, i32) {
    %c0_i32 = arith.constant 0 : i32
    %c0_i32_0 = arith.constant 0 : i32
    %c0_i32_1 = arith.constant 0 : i32
    return %c0_i32, %c0_i32_0 : i32, i32
  }
  func.func @transform_17(%arg0: i32, %arg1: i32) -> (i32, i32) {
    %c0_i32 = arith.constant 0 : i32
    %c0_i32_0 = arith.constant 0 : i32
    %c0_i32_1 = arith.constant 0 : i32
    return %c0_i32, %c0_i32_0 : i32, i32
  }
  func.func @transform_18(%arg0: i32, %arg1: i32) -> (i32, i32, i32) {
    %c0_i32 = arith.constant 0 : i32
    %c0_i32_0 = arith.constant 0 : i32
    return %arg0, %arg1, %c0_i32 : i32, i32, i32
  }
}

</mosaic_0001>

<llo_original>
// kernel: tpu_custom_call.1
$region0: #{tpu_custom_call.1}
  #allocation0 [shape = 'u32[]', space=smem, size = 0x4, offset = 0x4, fixed_abs, tag = 'smem constant byte address 0x4 - core index']
  #allocation1 [shape = 'u32[72,128]{1,0:T(1,128)}', space=vmem, size = 0x9000, scoped, tag = 'internal scratch']
  #allocation2 [shape = 'bf16[16,32]{1,0:T(8,128)(2,1)}', space=vmem, size = 0x1000, scoped, tag = 'scratch operand']
  #allocation3 [shape = 'bf16[16,32]{1,0:T(8,128)(2,1)}', space=vmem, size = 0x1000, scoped, tag = 'scratch operand']
  #allocation4 [shape = 'bf16[8,32]{1,0:T(8,128)(2,1)}', space=vmem, size = 0x800, scoped, tag = 'scratch operand']
  %s0 = inlined_call_operand.vmem [shape: f32[2,16,32], index: 0, kind: input, shape index: {}]
  %s1 = inlined_call_operand.vmem [shape: f32[1,16,32], index: 1, kind: input, shape index: {}]
  %s2 = inlined_call_operand.hbm [shape: bf16[32,32], index: 2, kind: input, shape index: {}]
  %s3 = inlined_call_operand.vmem [shape: f32[1,32], index: 3, kind: input, shape index: {}]
  %s4 = inlined_call_operand.hbm [shape: bf16[32,32], index: 4, kind: input, shape index: {}]
  %s5 = inlined_call_operand.vmem [shape: f32[1,32], index: 5, kind: input, shape index: {}]
  %s6 = inlined_call_operand.hbm [shape: bf16[32,32], index: 6, kind: input, shape index: {}]
  %s7 = inlined_call_operand.vmem [shape: f32[1,32], index: 7, kind: input, shape index: {}]
  %s8 = inlined_call_operand.hbm [shape: bf16[32,32], index: 8, kind: input, shape index: {}]
  %s9 = inlined_call_operand.vmem [shape: f32[1,32], index: 9, kind: input, shape index: {}]
  %s10 = inlined_call_operand.vmem [shape: f32[1,32], index: 10, kind: input, shape index: {}]
  %s11 = inlined_call_operand.vmem [shape: f32[1,32], index: 11, kind: input, shape index: {}]
  %s12 = inlined_call_operand.hbm [shape: bf16[32,64], index: 12, kind: input, shape index: {}]
  %s13 = inlined_call_operand.vmem [shape: f32[1,64], index: 13, kind: input, shape index: {}]
  %s14 = inlined_call_operand.vmem [shape: bf16[64,32], index: 14, kind: input, shape index: {}]
  %s15 = inlined_call_operand.vmem [shape: f32[1,32], index: 15, kind: input, shape index: {}]
  %s16 = inlined_call_operand.vmem [shape: f32[1,32], index: 16, kind: input, shape index: {}]
  %s17 = inlined_call_operand.vmem [shape: f32[1,32], index: 17, kind: input, shape index: {}]
  %s18 = inlined_call_operand.hbm [shape: f32[2,16,32], index: 18, kind: output, shape index: {}]
  %s19 = sld [smem:[#allocation0]]
  $region129: #{tpu_custom_call.1} parent=0
    _
  %s21 = ssub.s32 1, %s19
  %s22 = scalar_select 0, %s21, %s19
  $region1: #{tpu_custom_call.1} parent=0
    #allocation5 [shape = 'u8[8192]{0}', space=vmem, size = 0x2000, scoped, tag = 'input window, operand 2, single buffered']
    #allocation6 [shape = 's32[2]{0}', space=sflag, size = 0x8, scoped, tag = 'scoped memory for tpu_custom_call.1']
    #allocation7 [shape = 's32[2]{0}', space=sflag, size = 0x8, scoped, tag = 'scoped memory for tpu_custom_call.1']
    #allocation8 [shape = 'u8[8192]{0}', space=vmem, size = 0x2000, scoped, tag = 'input window, operand 4, single buffered']
    #allocation9 [shape = 's32[1]{0}', space=sflag, size = 0x4, scoped, tag = 'scoped memory for tpu_custom_call.1']
    #allocation10 [shape = 'u8[8192]{0}', space=vmem, size = 0x2000, scoped, tag = 'input window, operand 6, single buffered']
    #allocation11 [shape = 'u8[8192]{0}', space=vmem, size = 0x2000, scoped, tag = 'input window, operand 8, single buffered']
    #allocation12 [shape = 's32[1]{0}', space=sflag, size = 0x4, scoped, tag = 'scoped memory for tpu_custom_call.1']
    #allocation13 [shape = 'u8[8192]{0}', space=vmem, size = 0x2000, scoped, tag = 'input window, operand 12, single buffered']
    #allocation14 [shape = 'u8[8192]{0}', space=vmem, size = 0x2000, scoped, tag = 'output window, operand 0']
    %23 = vsyncpa [#allocation6], 0
    %24 = vsyncpa [#allocation9], 0
    %25 = vsyncpa [#allocation12], 0
    %26 = vsyncpa [#allocation7], 0
    %s27 = scalar_lea.sflag [#allocation7], 1
    %28 = vsyncpa %s27, 0
    loop: start=0, step=1, limit=6
    $region2: #{tpu_custom_call.1} parent=1 // loop_pre_header
      _
    $region3: #{tpu_custom_call.1} parent=1 // loop_header
      %s30 = sphi 0, %s34
      %p31 = scmp.ge.s32.totalorder %s30, 6
      %s37 = sphi 0, %s49
      %s38 = sphi 0, %s45
      %s39 = sphi 0, %s37
      %s40 = sphi 0, %s38
      %s41 = sphi 0, %s39
      %s42 = sphi 0, %s40
      %s52 = sphi 0, %s54
      %s55 = sphi 0, %s52
      %s56 = sphi 0, %s55
      %s72 = sphi 0, %s56
      %s76 = sphi 0, %s76
      %s78 = sphi 0, %s76
      %s79 = sphi 0, %s78
      %s93 = sphi 0, %s79
      %s97 = sphi 0, %s97
      %s99 = sphi 0, %s97
      %s100 = sphi 0, %s99
      %s114 = sphi 0, %s100
      %s118 = sphi 0, %s118
      %s120 = sphi 0, %s118
      %s121 = sphi 0, %s120
      %s135 = sphi 0, %s121
      %s139 = sphi 0, %s139
      %s141 = sphi 0, %s139
      %s142 = sphi 0, %s141
      %s156 = sphi 0, %s142
      %s160 = sphi 0, %s160
      %s162 = sphi 0, %s160
      %s163 = sphi 0, %s162
      %s177 = sphi 0, %s163
      %s181 = sphi 0, %s181
      %s183 = sphi 0, %s181
      %s184 = sphi 0, %s183
      %s198 = sphi 0, %s184
      %s202 = sphi 0, %s202
      %s204 = sphi 0, %s202
      %s205 = sphi 0, %s204
      %s219 = sphi 0, %s205
      %s223 = sphi 0, %s223
      %s225 = sphi 0, %s223
      %s226 = sphi 0, %s225
      %s240 = sphi 0, %s226
      %s244 = sphi 0, %s244
      %s246 = sphi 0, %s244
      %s247 = sphi 0, %s246
      %s261 = sphi 0, %s247
      %s265 = sphi 0, %s265
      %s267 = sphi 0, %s265
      %s268 = sphi 0, %s267
      %s282 = sphi 0, %s268
      %s286 = sphi 0, %s286
      %s288 = sphi 0, %s286
      %s289 = sphi 0, %s288
      %s303 = sphi 0, %s289
      %s307 = sphi 0, %s307
      %s309 = sphi 0, %s307
      %s310 = sphi 0, %s309
      %s324 = sphi 0, %s310
      %s328 = sphi 0, %s328
      %s330 = sphi 0, %s328
      %s331 = sphi 0, %s330
      %s345 = sphi 0, %s331
      %s349 = sphi 0, %s349
      %s351 = sphi 0, %s349
      %s352 = sphi 0, %s351
      %s366 = sphi 0, %s352
      %s370 = sphi 0, %s370
      %s372 = sphi 0, %s370
      %s373 = sphi 0, %s372
      %s387 = sphi 0, %s373
      %s391 = sphi 0, %s391
      %s393 = sphi 0, %s391
      %s394 = sphi 0, %s393
      %s408 = sphi 0, %s394
      %s412 = sphi 0, %s412
      %s414 = sphi 0, %s412
      %s415 = sphi 0, %s414
      %s429 = sphi 0, %s415
      %s437 = sphi 0, %s439
      %s440 = sphi 0, %s437
      %s441 = sphi 0, %s440
      %s457 = sphi 0, %s441
    $region4: #{tpu_custom_call.1} parent=1 // loop_header_branch
      %33 = sbr.rel (%p31) target = $region8
    $region5: #{tpu_custom_call.1} parent=1 // loop_body
      %s35 = ssub.s32 %s30, 1
      %s36 = ssub.s32 %s30, 2
      %s43 = sadd.s32 1, %s38
      %p44 = scmp.ge.s32.totalorder %s43, 2
      %s45 = scalar_select %p44, 0, %s43
      %s46 = sadd.s32 1, %s37
      %s47 = scalar_select %p44, %s46, %s37
      %p48 = scmp.ge.s32.totalorder %s47, 2
      %s49 = scalar_select %p48, 0, %s47
      %s50 = ssub.s32 %s37, %s49
      %p51 = scmp.eq.s32.totalorder %s50, 0
      %s53 = sadd.s32 %s52, 1
      %s54 = scalar_select %p51, %s52, %s53
      %p57 = pneg %p51
      %p58 = scmp.eq.s32.totalorder %s30, 3
      %p59 = por %p57, %p58
      %p60 = scmp.ne.s32.totalorder %s52, %s55
      %p61 = scmp.eq.s32.totalorder %s30, 0
      %p62 = por %p60, %p61
      %p63 = scmp.ne.s32.totalorder %s52, %s55
      %p64 = scmp.eq.s32.totalorder %s35, 3
      %p65 = por %p63, %p64
      %p66 = scmp.ne.s32.totalorder %s55, %s56
      %p67 = scmp.eq.s32.totalorder %s35, 0
      %p68 = por %p66, %p67
      %p69 = scmp.ne.s32.totalorder %s55, %s56
      %p70 = scmp.eq.s32.totalorder %s36, 3
      %p71 = por %p69, %p70
      %p73 = scmp.ne.s32.totalorder %s56, %s72
      %p74 = scmp.eq.s32.totalorder %s36, 0
      %p75 = por %p73, %p74
      %s77 = sadd.s32 %s76, 1
      %p80 = scmp.eq.s32.totalorder %s30, 3
      %p81 = scmp.ne.s32.totalorder %s76, %s78
      %p82 = scmp.eq.s32.totalorder %s30, 0
      %p83 = por %p81, %p82
      %p84 = scmp.ne.s32.totalorder %s76, %s78
      %p85 = scmp.eq.s32.totalorder %s35, 3
      %p86 = por %p84, %p85
      %p87 = scmp.ne.s32.totalorder %s78, %s79
      %p88 = scmp.eq.s32.totalorder %s35, 0
      %p89 = por %p87, %p88
      %p90 = scmp.ne.s32.totalorder %s78, %s79
      %p91 = scmp.eq.s32.totalorder %s36, 3
      %p92 = por %p90, %p91
      %p94 = scmp.ne.s32.totalorder %s79, %s93
      %p95 = scmp.eq.s32.totalorder %s36, 0
      %p96 = por %p94, %p95
      %s98 = sadd.s32 %s97, 1
      %p101 = scmp.eq.s32.totalorder %s30, 3
      %p102 = scmp.ne.s32.totalorder %s97, %s99
      %p103 = scmp.eq.s32.totalorder %s30, 0
      %p104 = por %p102, %p103
      %p105 = scmp.ne.s32.totalorder %s97, %s99
      %p106 = scmp.eq.s32.totalorder %s35, 3
      %p107 = por %p105, %p106
      %p108 = scmp.ne.s32.totalorder %s99, %s100
      %p109 = scmp.eq.s32.totalorder %s35, 0
      %p110 = por %p108, %p109
      %p111 = scmp.ne.s32.totalorder %s99, %s100
      %p112 = scmp.eq.s32.totalorder %s36, 3
      %p113 = por %p111, %p112
      %p115 = scmp.ne.s32.totalorder %s100, %s114
      %p116 = scmp.eq.s32.totalorder %s36, 0
      %p117 = por %p115, %p116
      %s119 = sadd.s32 %s118, 1
      %p122 = scmp.eq.s32.totalorder %s30, 3
      %p123 = scmp.ne.s32.totalorder %s118, %s120
      %p124 = scmp.eq.s32.totalorder %s30, 0
      %p125 = por %p123, %p124
      %p126 = scmp.ne.s32.totalorder %s118, %s120
      %p127 = scmp.eq.s32.totalorder %s35, 3
      %p128 = por %p126, %p127
      %p129 = scmp.ne.s32.totalorder %s120, %s121
      %p130 = scmp.eq.s32.totalorder %s35, 0
      %p131 = por %p129, %p130
      %p132 = scmp.ne.s32.totalorder %s120, %s121
      %p133 = scmp.eq.s32.totalorder %s36, 3
      %p134 = por %p132, %p133
      %p136 = scmp.ne.s32.totalorder %s121, %s135
      %p137 = scmp.eq.s32.totalorder %s36, 0
      %p138 = por %p136, %p137
      %s140 = sadd.s32 %s139, 1
      %p143 = scmp.eq.s32.totalorder %s30, 3
      %p144 = scmp.ne.s32.totalorder %s139, %s141
      %p145 = scmp.eq.s32.totalorder %s30, 0
      %p146 = por %p144, %p145
      %p147 = scmp.ne.s32.totalorder %s139, %s141
      %p148 = scmp.eq.s32.totalorder %s35, 3
      %p149 = por %p147, %p148
      %p150 = scmp.ne.s32.totalorder %s141, %s142
      %p151 = scmp.eq.s32.totalorder %s35, 0
      %p152 = por %p150, %p151
      %p153 = scmp.ne.s32.totalorder %s141, %s142
      %p154 = scmp.eq.s32.totalorder %s36, 3
      %p155 = por %p153, %p154
      %p157 = scmp.ne.s32.totalorder %s142, %s156
      %p158 = scmp.eq.s32.totalorder %s36, 0
      %p159 = por %p157, %p158
      %s161 = sadd.s32 %s160, 1
      %p164 = scmp.eq.s32.totalorder %s30, 3
      %p165 = scmp.ne.s32.totalorder %s160, %s162
      %p166 = scmp.eq.s32.totalorder %s30, 0
      %p167 = por %p165, %p166
      %p168 = scmp.ne.s32.totalorder %s160, %s162
      %p169 = scmp.eq.s32.totalorder %s35, 3
      %p170 = por %p168, %p169
      %p171 = scmp.ne.s32.totalorder %s162, %s163
      %p172 = scmp.eq.s32.totalorder %s35, 0
      %p173 = por %p171, %p172
      %p174 = scmp.ne.s32.totalorder %s162, %s163
      %p175 = scmp.eq.s32.totalorder %s36, 3
      %p176 = por %p174, %p175
      %p178 = scmp.ne.s32.totalorder %s163, %s177
      %p179 = scmp.eq.s32.totalorder %s36, 0
      %p180 = por %p178, %p179
      %s182 = sadd.s32 %s181, 1
      %p185 = scmp.eq.s32.totalorder %s30, 3
      %p186 = scmp.ne.s32.totalorder %s181, %s183
      %p187 = scmp.eq.s32.totalorder %s30, 0
      %p188 = por %p186, %p187
      %p189 = scmp.ne.s32.totalorder %s181, %s183
      %p190 = scmp.eq.s32.totalorder %s35, 3
      %p191 = por %p189, %p190
      %p192 = scmp.ne.s32.totalorder %s183, %s184
      %p193 = scmp.eq.s32.totalorder %s35, 0
      %p194 = por %p192, %p193
      %p195 = scmp.ne.s32.totalorder %s183, %s184
      %p196 = scmp.eq.s32.totalorder %s36, 3
      %p197 = por %p195, %p196
      %p199 = scmp.ne.s32.totalorder %s184, %s198
      %p200 = scmp.eq.s32.totalorder %s36, 0
      %p201 = por %p199, %p200
      %s203 = sadd.s32 %s202, 1
      %p206 = scmp.eq.s32.totalorder %s30, 3
      %p207 = scmp.ne.s32.totalorder %s202, %s204
      %p208 = scmp.eq.s32.totalorder %s30, 0
      %p209 = por %p207, %p208
      %p210 = scmp.ne.s32.totalorder %s202, %s204
      %p211 = scmp.eq.s32.totalorder %s35, 3
      %p212 = por %p210, %p211
      %p213 = scmp.ne.s32.totalorder %s204, %s205
      %p214 = scmp.eq.s32.totalorder %s35, 0
      %p215 = por %p213, %p214
      %p216 = scmp.ne.s32.totalorder %s204, %s205
      %p217 = scmp.eq.s32.totalorder %s36, 3
      %p218 = por %p216, %p217
      %p220 = scmp.ne.s32.totalorder %s205, %s219
      %p221 = scmp.eq.s32.totalorder %s36, 0
      %p222 = por %p220, %p221
      %s224 = sadd.s32 %s223, 1
      %p227 = scmp.eq.s32.totalorder %s30, 3
      %p228 = scmp.ne.s32.totalorder %s223, %s225
      %p229 = scmp.eq.s32.totalorder %s30, 0
      %p230 = por %p228, %p229
      %p231 = scmp.ne.s32.totalorder %s223, %s225
      %p232 = scmp.eq.s32.totalorder %s35, 3
      %p233 = por %p231, %p232
      %p234 = scmp.ne.s32.totalorder %s225, %s226
      %p235 = scmp.eq.s32.totalorder %s35, 0
      %p236 = por %p234, %p235
      %p237 = scmp.ne.s32.totalorder %s225, %s226
      %p238 = scmp.eq.s32.totalorder %s36, 3
      %p239 = por %p237, %p238
      %p241 = scmp.ne.s32.totalorder %s226, %s240
      %p242 = scmp.eq.s32.totalorder %s36, 0
      %p243 = por %p241, %p242
      %s245 = sadd.s32 %s244, 1
      %p248 = scmp.eq.s32.totalorder %s30, 3
      %p249 = scmp.ne.s32.totalorder %s244, %s246
      %p250 = scmp.eq.s32.totalorder %s30, 0
      %p251 = por %p249, %p250
      %p252 = scmp.ne.s32.totalorder %s244, %s246
      %p253 = scmp.eq.s32.totalorder %s35, 3
      %p254 = por %p252, %p253
      %p255 = scmp.ne.s32.totalorder %s246, %s247
      %p256 = scmp.eq.s32.totalorder %s35, 0
      %p257 = por %p255, %p256
      %p258 = scmp.ne.s32.totalorder %s246, %s247
      %p259 = scmp.eq.s32.totalorder %s36, 3
      %p260 = por %p258, %p259
      %p262 = scmp.ne.s32.totalorder %s247, %s261
      %p263 = scmp.eq.s32.totalorder %s36, 0
      %p264 = por %p262, %p263
      %s266 = sadd.s32 %s265, 1
      %p269 = scmp.eq.s32.totalorder %s30, 3
      %p270 = scmp.ne.s32.totalorder %s265, %s267
      %p271 = scmp.eq.s32.totalorder %s30, 0
      %p272 = por %p270, %p271
      %p273 = scmp.ne.s32.totalorder %s265, %s267
      %p274 = scmp.eq.s32.totalorder %s35, 3
      %p275 = por %p273, %p274
      %p276 = scmp.ne.s32.totalorder %s267, %s268
      %p277 = scmp.eq.s32.totalorder %s35, 0
      %p278 = por %p276, %p277
      %p279 = scmp.ne.s32.totalorder %s267, %s268
      %p280 = scmp.eq.s32.totalorder %s36, 3
      %p281 = por %p279, %p280
      %p283 = scmp.ne.s32.totalorder %s268, %s282
      %p284 = scmp.eq.s32.totalorder %s36, 0
      %p285 = por %p283, %p284
      %s287 = sadd.s32 %s286, 1
      %p290 = scmp.eq.s32.totalorder %s30, 3
      %p291 = scmp.ne.s32.totalorder %s286, %s288
      %p292 = scmp.eq.s32.totalorder %s30, 0
      %p293 = por %p291, %p292
      %p294 = scmp.ne.s32.totalorder %s286, %s288
      %p295 = scmp.eq.s32.totalorder %s35, 3
      %p296 = por %p294, %p295
      %p297 = scmp.ne.s32.totalorder %s288, %s289
      %p298 = scmp.eq.s32.totalorder %s35, 0
      %p299 = por %p297, %p298
      %p300 = scmp.ne.s32.totalorder %s288, %s289
      %p301 = scmp.eq.s32.totalorder %s36, 3
      %p302 = por %p300, %p301
      %p304 = scmp.ne.s32.totalorder %s289, %s303
      %p305 = scmp.eq.s32.totalorder %s36, 0
      %p306 = por %p304, %p305
      %s308 = sadd.s32 %s307, 1
      %p311 = scmp.eq.s32.totalorder %s30, 3
      %p312 = scmp.ne.s32.totalorder %s307, %s309
      %p313 = scmp.eq.s32.totalorder %s30, 0
      %p314 = por %p312, %p313
      %p315 = scmp.ne.s32.totalorder %s307, %s309
      %p316 = scmp.eq.s32.totalorder %s35, 3
      %p317 = por %p315, %p316
      %p318 = scmp.ne.s32.totalorder %s309, %s310
      %p319 = scmp.eq.s32.totalorder %s35, 0
      %p320 = por %p318, %p319
      %p321 = scmp.ne.s32.totalorder %s309, %s310
      %p322 = scmp.eq.s32.totalorder %s36, 3
      %p323 = por %p321, %p322
      %p325 = scmp.ne.s32.totalorder %s310, %s324
      %p326 = scmp.eq.s32.totalorder %s36, 0
      %p327 = por %p325, %p326
      %s329 = sadd.s32 %s328, 1
      %p332 = scmp.eq.s32.totalorder %s30, 3
      %p333 = scmp.ne.s32.totalorder %s328, %s330
      %p334 = scmp.eq.s32.totalorder %s30, 0
      %p335 = por %p333, %p334
      %p336 = scmp.ne.s32.totalorder %s328, %s330
      %p337 = scmp.eq.s32.totalorder %s35, 3
      %p338 = por %p336, %p337
      %p339 = scmp.ne.s32.totalorder %s330, %s331
      %p340 = scmp.eq.s32.totalorder %s35, 0
      %p341 = por %p339, %p340
      %p342 = scmp.ne.s32.totalorder %s330, %s331
      %p343 = scmp.eq.s32.totalorder %s36, 3
      %p344 = por %p342, %p343
      %p346 = scmp.ne.s32.totalorder %s331, %s345
      %p347 = scmp.eq.s32.totalorder %s36, 0
      %p348 = por %p346, %p347
      %s350 = sadd.s32 %s349, 1
      %p353 = scmp.eq.s32.totalorder %s30, 3
      %p354 = scmp.ne.s32.totalorder %s349, %s351
      %p355 = scmp.eq.s32.totalorder %s30, 0
      %p356 = por %p354, %p355
      %p357 = scmp.ne.s32.totalorder %s349, %s351
      %p358 = scmp.eq.s32.totalorder %s35, 3
      %p359 = por %p357, %p358
      %p360 = scmp.ne.s32.totalorder %s351, %s352
      %p361 = scmp.eq.s32.totalorder %s35, 0
      %p362 = por %p360, %p361
      %p363 = scmp.ne.s32.totalorder %s351, %s352
      %p364 = scmp.eq.s32.totalorder %s36, 3
      %p365 = por %p363, %p364
      %p367 = scmp.ne.s32.totalorder %s352, %s366
      %p368 = scmp.eq.s32.totalorder %s36, 0
      %p369 = por %p367, %p368
      %s371 = sadd.s32 %s370, 1
      %p374 = scmp.eq.s32.totalorder %s30, 3
      %p375 = scmp.ne.s32.totalorder %s370, %s372
      %p376 = scmp.eq.s32.totalorder %s30, 0
      %p377 = por %p375, %p376
      %p378 = scmp.ne.s32.totalorder %s370, %s372
      %p379 = scmp.eq.s32.totalorder %s35, 3
      %p380 = por %p378, %p379
      %p381 = scmp.ne.s32.totalorder %s372, %s373
      %p382 = scmp.eq.s32.totalorder %s35, 0
      %p383 = por %p381, %p382
      %p384 = scmp.ne.s32.totalorder %s372, %s373
      %p385 = scmp.eq.s32.totalorder %s36, 3
      %p386 = por %p384, %p385
      %p388 = scmp.ne.s32.totalorder %s373, %s387
      %p389 = scmp.eq.s32.totalorder %s36, 0
      %p390 = por %p388, %p389
      %s392 = sadd.s32 %s391, 1
      %p395 = scmp.eq.s32.totalorder %s30, 3
      %p396 = scmp.ne.s32.totalorder %s391, %s393
      %p397 = scmp.eq.s32.totalorder %s30, 0
      %p398 = por %p396, %p397
      %p399 = scmp.ne.s32.totalorder %s391, %s393
      %p400 = scmp.eq.s32.totalorder %s35, 3
      %p401 = por %p399, %p400
      %p402 = scmp.ne.s32.totalorder %s393, %s394
      %p403 = scmp.eq.s32.totalorder %s35, 0
      %p404 = por %p402, %p403
      %p405 = scmp.ne.s32.totalorder %s393, %s394
      %p406 = scmp.eq.s32.totalorder %s36, 3
      %p407 = por %p405, %p406
      %p409 = scmp.ne.s32.totalorder %s394, %s408
      %p410 = scmp.eq.s32.totalorder %s36, 0
      %p411 = por %p409, %p410
      %s413 = sadd.s32 %s412, 1
      %p416 = scmp.eq.s32.totalorder %s30, 3
      %p417 = scmp.ne.s32.totalorder %s412, %s414
      %p418 = scmp.eq.s32.totalorder %s30, 0
      %p419 = por %p417, %p418
      %p420 = scmp.ne.s32.totalorder %s412, %s414
      %p421 = scmp.eq.s32.totalorder %s35, 3
      %p422 = por %p420, %p421
      %p423 = scmp.ne.s32.totalorder %s414, %s415
      %p424 = scmp.eq.s32.totalorder %s35, 0
      %p425 = por %p423, %p424
      %p426 = scmp.ne.s32.totalorder %s414, %s415
      %p427 = scmp.eq.s32.totalorder %s36, 3
      %p428 = por %p426, %p427
      %p430 = scmp.ne.s32.totalorder %s415, %s429
      %p431 = scmp.eq.s32.totalorder %s36, 0
      %p432 = por %p430, %p431
      %s433 = ssub.s32 %s37, %s49
      %s434 = ssub.s32 %s38, %s45
      %s435 = sor.u32 %s433, %s434
      %p436 = scmp.eq.s32.totalorder %s435, 0
      %s438 = sadd.s32 %s437, 1
      %s439 = scalar_select %p436, %s437, %s438
      %p442 = pneg %p436
      %p443 = scmp.eq.s32.totalorder %s30, 3
      %p444 = por %p442, %p443
      %p445 = scmp.ne.s32.totalorder %s437, %s440
      %p446 = scmp.eq.s32.totalorder %s30, 0
      %p447 = por %p445, %p446
      %p448 = scmp.ne.s32.totalorder %s437, %s440
      %p449 = scmp.eq.s32.totalorder %s35, 3
      %p450 = por %p448, %p449
      %p451 = scmp.ne.s32.totalorder %s440, %s441
      %p452 = scmp.eq.s32.totalorder %s35, 0
      %p453 = por %p451, %p452
      %p454 = scmp.ne.s32.totalorder %s440, %s441
      %p455 = scmp.eq.s32.totalorder %s36, 3
      %p456 = por %p454, %p455
      %p458 = scmp.ne.s32.totalorder %s441, %s457
      %p459 = scmp.eq.s32.totalorder %s36, 0
      %p460 = por %p458, %p459
      %p461 = scmp.le.s32.totalorder 1, %s30
      %p462 = scmp.lt.s32.totalorder %s30, 5
      %p463 = pnand %p461, %p462
      %p464 = pneg %p463
      // Predicated region
      $region9: #{tpu_custom_call.1} parent=5 // pred_check
        _
      $region10: #{tpu_custom_call.1} parent=5 // pred_check_branch
        %466 = sbr.rel (%p463) target = $region12
      $region11: #{tpu_custom_call.1} parent=5 // pred_region
        %s467 = ssub.s32 %s30, 1
        // Predicated region
        $region13: #{tpu_custom_call.1} parent=11 // pred_check
          %p468 = pneg %p89
        $region14: #{tpu_custom_call.1} parent=11 // pred_check_branch
          %470 = sbr.rel (%p468) target = $region16
        $region15: #{tpu_custom_call.1} parent=11 // pred_region
          _
        $region16: #{tpu_custom_call.1} parent=11 // pred_fallthru
          _
        // Predicated region
        $region17: #{tpu_custom_call.1} parent=11 // pred_check
          %p471 = pneg %p110
        $region18: #{tpu_custom_call.1} parent=11 // pred_check_branch
          %473 = sbr.rel (%p471) target = $region20
        $region19: #{tpu_custom_call.1} parent=11 // pred_region
          %475 = vsyncadd [#allocation6], 0
          %s476 = sshll.u32 %s2, 4
          %s477 = int_to_ptr.hbm [resolvable:$true] %s476
          %s478 = sshll.u32 [#allocation5], 4
          %s479 = int_to_ptr.vmem [resolvable:$true] %s478
          %484 = dma.hbm_to_vmem [thread:$0]  %s477, 256, %s479, [#allocation6], 64, 64, 4
        $region20: #{tpu_custom_call.1} parent=11 // pred_fallthru
          _
        // Predicated region
        $region21: #{tpu_custom_call.1} parent=11 // pred_check
          %p485 = pneg %p131
        $region22: #{tpu_custom_call.1} parent=11 // pred_check_branch
          %487 = sbr.rel (%p485) target = $region24
        $region23: #{tpu_custom_call.1} parent=11 // pred_region
          _
        $region24: #{tpu_custom_call.1} parent=11 // pred_fallthru
          _
        // Predicated region
        $region25: #{tpu_custom_call.1} parent=11 // pred_check
          %p488 = pneg %p152
        $region26: #{tpu_custom_call.1} parent=11 // pred_check_branch
          %490 = sbr.rel (%p488) target = $region28
        $region27: #{tpu_custom_call.1} parent=11 // pred_region
          %492 = vsyncadd [#allocation9], 0
          %s493 = sshll.u32 %s4, 4
          %s494 = int_to_ptr.hbm [resolvable:$true] %s493
          %s495 = sshll.u32 [#allocation8], 4
          %s496 = int_to_ptr.vmem [resolvable:$true] %s495
          %501 = dma.hbm_to_vmem [thread:$0]  %s494, 256, %s496, [#allocation9], 64, 64, 4
        $region28: #{tpu_custom_call.1} parent=11 // pred_fallthru
          _
        // Predicated region
        $region29: #{tpu_custom_call.1} parent=11 // pred_check
          %p502 = pneg %p173
        $region30: #{tpu_custom_call.1} parent=11 // pred_check_branch
          %504 = sbr.rel (%p502) target = $region32
        $region31: #{tpu_custom_call.1} parent=11 // pred_region
          _
        $region32: #{tpu_custom_call.1} parent=11 // pred_fallthru
          _
        // Predicated region
        $region33: #{tpu_custom_call.1} parent=11 // pred_check
          %p505 = pneg %p194
        $region34: #{tpu_custom_call.1} parent=11 // pred_check_branch
          %507 = sbr.rel (%p505) target = $region36
        $region35: #{tpu_custom_call.1} parent=11 // pred_region
          %509 = vsyncadd [#allocation9], 0
          %s510 = sshll.u32 %s6, 4
          %s511 = int_to_ptr.hbm [resolvable:$true] %s510
          %s512 = sshll.u32 [#allocation10], 4
          %s513 = int_to_ptr.vmem [resolvable:$true] %s512
          %518 = dma.hbm_to_vmem [thread:$0]  %s511, 256, %s513, [#allocation9], 64, 64, 4
        $region36: #{tpu_custom_call.1} parent=11 // pred_fallthru
          _
        // Predicated region
        $region37: #{tpu_custom_call.1} parent=11 // pred_check
          %p519 = pneg %p215
        $region38: #{tpu_custom_call.1} parent=11 // pred_check_branch
          %521 = sbr.rel (%p519) target = $region40
        $region39: #{tpu_custom_call.1} parent=11 // pred_region
          _
        $region40: #{tpu_custom_call.1} parent=11 // pred_fallthru
          _
        // Predicated region
        $region41: #{tpu_custom_call.1} parent=11 // pred_check
          %p522 = pneg %p236
        $region42: #{tpu_custom_call.1} parent=11 // pred_check_branch
          %524 = sbr.rel (%p522) target = $region44
        $region43: #{tpu_custom_call.1} parent=11 // pred_region
          %526 = vsyncadd [#allocation12], 0
          %s527 = sshll.u32 %s8, 4
          %s528 = int_to_ptr.hbm [resolvable:$true] %s527
          %s529 = sshll.u32 [#allocation11], 4
          %s530 = int_to_ptr.vmem [resolvable:$true] %s529
          %535 = dma.hbm_to_vmem [thread:$0]  %s528, 256, %s530, [#allocation12], 64, 64, 4
        $region44: #{tpu_custom_call.1} parent=11 // pred_fallthru
          _
        // Predicated region
        $region45: #{tpu_custom_call.1} parent=11 // pred_check
          %p536 = pneg %p257
        $region46: #{tpu_custom_call.1} parent=11 // pred_check_branch
          %538 = sbr.rel (%p536) target = $region48
        $region47: #{tpu_custom_call.1} parent=11 // pred_region
          _
        $region48: #{tpu_custom_call.1} parent=11 // pred_fallthru
          _
        // Predicated region
        $region49: #{tpu_custom_call.1} parent=11 // pred_check
          %p539 = pneg %p278
        $region50: #{tpu_custom_call.1} parent=11 // pred_check_branch
          %541 = sbr.rel (%p539) target = $region52
        $region51: #{tpu_custom_call.1} parent=11 // pred_region
          _
        $region52: #{tpu_custom_call.1} parent=11 // pred_fallthru
          _
        // Predicated region
        $region53: #{tpu_custom_call.1} parent=11 // pred_check
          %p542 = pneg %p299
        $region54: #{tpu_custom_call.1} parent=11 // pred_check_branch
          %544 = sbr.rel (%p542) target = $region56
        $region55: #{tpu_custom_call.1} parent=11 // pred_region
          _
        $region56: #{tpu_custom_call.1} parent=11 // pred_fallthru
          _
        // Predicated region
        $region57: #{tpu_custom_call.1} parent=11 // pred_check
          %p545 = pneg %p320
        $region58: #{tpu_custom_call.1} parent=11 // pred_check_branch
          %547 = sbr.rel (%p545) target = $region60
        $region59: #{tpu_custom_call.1} parent=11 // pred_region
          %549 = vsyncadd [#allocation12], 0
          %s550 = sshll.u32 %s12, 4
          %s551 = int_to_ptr.hbm [resolvable:$true] %s550
          %s552 = sshll.u32 [#allocation13], 4
          %s553 = int_to_ptr.vmem [resolvable:$true] %s552
          %558 = dma.hbm_to_vmem [thread:$0]  %s551, 256, %s553, [#allocation12], 64, 64, 4
        $region60: #{tpu_custom_call.1} parent=11 // pred_fallthru
          _
        // Predicated region
        $region61: #{tpu_custom_call.1} parent=11 // pred_check
          %p559 = pneg %p341
        $region62: #{tpu_custom_call.1} parent=11 // pred_check_branch
          %561 = sbr.rel (%p559) target = $region64
        $region63: #{tpu_custom_call.1} parent=11 // pred_region
          _
        $region64: #{tpu_custom_call.1} parent=11 // pred_fallthru
          _
        // Predicated region
        $region65: #{tpu_custom_call.1} parent=11 // pred_check
          %p562 = pneg %p362
        $region66: #{tpu_custom_call.1} parent=11 // pred_check_branch
          %564 = sbr.rel (%p562) target = $region68
        $region67: #{tpu_custom_call.1} parent=11 // pred_region
          _
        $region68: #{tpu_custom_call.1} parent=11 // pred_fallthru
          _
        // Predicated region
        $region69: #{tpu_custom_call.1} parent=11 // pred_check
          %p565 = pneg %p383
        $region70: #{tpu_custom_call.1} parent=11 // pred_check_branch
          %567 = sbr.rel (%p565) target = $region72
        $region71: #{tpu_custom_call.1} parent=11 // pred_region
          _
        $region72: #{tpu_custom_call.1} parent=11 // pred_fallthru
          _
        // Predicated region
        $region73: #{tpu_custom_call.1} parent=11 // pred_check
          %p568 = pneg %p404
        $region74: #{tpu_custom_call.1} parent=11 // pred_check_branch
          %570 = sbr.rel (%p568) target = $region76
        $region75: #{tpu_custom_call.1} parent=11 // pred_region
          _
        $region76: #{tpu_custom_call.1} parent=11 // pred_fallthru
          _
        // Predicated region
        $region77: #{tpu_custom_call.1} parent=11 // pred_check
          %p571 = pneg %p425
        $region78: #{tpu_custom_call.1} parent=11 // pred_check_branch
          %573 = sbr.rel (%p571) target = $region80
        $region79: #{tpu_custom_call.1} parent=11 // pred_region
          _
        $region80: #{tpu_custom_call.1} parent=11 // pred_fallthru
          _
      $region12: #{tpu_custom_call.1} parent=5 // pred_fallthru
        _
      %p574 = scmp.lt.s32.totalorder %s30, 4
      // Predicated region
      $region81: #{tpu_custom_call.1} parent=5 // pred_check
        %p575 = pneg %p574
      $region82: #{tpu_custom_call.1} parent=5 // pred_check_branch
        %577 = sbr.rel (%p575) target = $region84
      $region83: #{tpu_custom_call.1} parent=5 // pred_region
        // Predicated region
        $region85: #{tpu_custom_call.1} parent=83 // pred_check
          %p578 = pneg %p62
        $region86: #{tpu_custom_call.1} parent=83 // pred_check_branch
          %580 = sbr.rel (%p578) target = $region88
        $region87: #{tpu_custom_call.1} parent=83 // pred_region
          %p581 = scmp.lt.s32.totalorder %s37, 1
          %s582 = scalar_select %p581, %s37, 1
          %s583 = smul.addr %s582, 2
          %s584 = smul.addr %s583, 8
          %s585 = scalar_lea.vmem %s0, %s584
        $region88: #{tpu_custom_call.1} parent=83 // pred_fallthru
          _
      $region84: #{tpu_custom_call.1} parent=5 // pred_fallthru
        _
      %p586 = scmp.le.s32.totalorder 1, %s30
      %p587 = scmp.lt.s32.totalorder %s30, 5
      %p588 = pnand %p586, %p587
      %p589 = pneg %p588
      // Predicated region
      $region89: #{tpu_custom_call.1} parent=5 // pred_check
        _
      $region90: #{tpu_custom_call.1} parent=5 // pred_check_branch
        %591 = sbr.rel (%p588) target = $region92
      $region91: #{tpu_custom_call.1} parent=5 // pred_region
        %s592 = ssub.s32 %s30, 1
        // Predicated region
        $region93: #{tpu_custom_call.1} parent=91 // pred_check
          %p593 = pneg %p110
        $region94: #{tpu_custom_call.1} parent=91 // pred_check_branch
          %595 = sbr.rel (%p593) target = $region96
        $region95: #{tpu_custom_call.1} parent=91 // pred_region
          %597 = dma.done [#allocation6], 256
        $region96: #{tpu_custom_call.1} parent=91 // pred_fallthru
          _
        // Predicated region
        $region97: #{tpu_custom_call.1} parent=91 // pred_check
          %p598 = pneg %p152
        $region98: #{tpu_custom_call.1} parent=91 // pred_check_branch
          %600 = sbr.rel (%p598) target = $region100
        $region99: #{tpu_custom_call.1} parent=91 // pred_region
          %602 = dma.done [#allocation9], 256
        $region100: #{tpu_custom_call.1} parent=91 // pred_fallthru
          _
        // Predicated region
        $region101: #{tpu_custom_call.1} parent=91 // pred_check
          %p603 = pneg %p194
        $region102: #{tpu_custom_call.1} parent=91 // pred_check_branch
          %605 = sbr.rel (%p603) target = $region104
        $region103: #{tpu_custom_call.1} parent=91 // pred_region
          %607 = dma.done [#allocation9], 256
        $region104: #{tpu_custom_call.1} parent=91 // pred_fallthru
          _
        // Predicated region
        $region105: #{tpu_custom_call.1} parent=91 // pred_check
          %p608 = pneg %p236
        $region106: #{tpu_custom_call.1} parent=91 // pred_check_branch
          %610 = sbr.rel (%p608) target = $region108
        $region107: #{tpu_custom_call.1} parent=91 // pred_region
          %612 = dma.done [#allocation12], 256
        $region108: #{tpu_custom_call.1} parent=91 // pred_fallthru
          _
        // Predicated region
        $region109: #{tpu_custom_call.1} parent=91 // pred_check
          %p613 = pneg %p320
        $region110: #{tpu_custom_call.1} parent=91 // pred_check_branch
          %615 = sbr.rel (%p613) target = $region112
        $region111: #{tpu_custom_call.1} parent=91 // pred_region
          %617 = dma.done [#allocation12], 256
        $region112: #{tpu_custom_call.1} parent=91 // pred_fallthru
          _
        %p618 = scmp.lt.s32.totalorder %s39, 1
        %s619 = scalar_select %p618, %s39, 1
        %s620 = smul.addr %s619, 2
        %s621 = smul.addr %s620, 8
        %s622 = scalar_lea.vmem %s0, %s621
        %p623 = pneg %p68
        %p624 = pneg %p65
        %p625 = pneg %p89
        %p626 = pneg %p86
        %p627 = pneg %p110
        %p628 = pneg %p107
        %p629 = pneg %p131
        %p630 = pneg %p128
        %p631 = pneg %p152
        %p632 = pneg %p149
        %p633 = pneg %p173
        %p634 = pneg %p170
        %p635 = pneg %p194
        %p636 = pneg %p191
        %p637 = pneg %p215
        %p638 = pneg %p212
        %p639 = pneg %p236
        %p640 = pneg %p233
        %p641 = pneg %p257
        %p642 = pneg %p254
        %p643 = pneg %p278
        %p644 = pneg %p275
        %p645 = pneg %p299
        %p646 = pneg %p296
        %p647 = pneg %p320
        %p648 = pneg %p317
        %p649 = pneg %p341
        %p650 = pneg %p338
        %p651 = pneg %p362
        %p652 = pneg %p359
        %p653 = pneg %p383
        %p654 = pneg %p380
        %p655 = pneg %p404
        %p656 = pneg %p401
        %p657 = pneg %p425
        %p658 = pneg %p422
        %p659 = pneg %p453
        %p660 = pneg %p450
        %s661 = sand.u32 %s440, 1
        %s662 = scalar_lea.sflag [#allocation7], %s661
        %s663 = sand.u32 %s440, 1
        %s664 = smul.addr %s663, 8
        %s665 = scalar_lea.vmem [#allocation14], %s664
        %p666 = scmp.lt.s32.totalorder %s39, 1
        %s667 = scalar_select %p666, %s39, 1
        %s668 = smul.addr %s667, 2
        %s669 = smul.addr %s668, 8
        %s670 = scalar_lea.vmem %s0, %s669
        %p672 = scmp.eq.s32.totalorder %s40, 0
        // Predicated region
        $region113: #{tpu_custom_call.1} parent=91 // pred_check
          %p673 = pneg %p672
        $region114: #{tpu_custom_call.1} parent=91 // pred_check_branch
          %675 = sbr.rel (%p673) target = $region116
        $region115: #{tpu_custom_call.1} parent=91 // pred_region
          %v676 = vld [vmem:[%s670] sm:$0xff]
          %v677 = vld [vmem:[%s670 + $0x8] sm:$0xff]
          %v678 = vld [vmem:[%s1] sm:$0xff]
          %v679 = vld [vmem:[%s1 + $0x8] sm:$0xff]
          %v680 = vadd.f32 %v676, %v678
          %v681 = vadd.f32 %v677, %v679
          %v682 = vpack.c.bf16 %v681, %v680
          %v683 = vld [vmem:[#allocation8] sm:$0xf]
          %v684 = vld [vmem:[#allocation8 + $0x4] sm:$0xf]
          %v685 = vld [vmem:[#allocation8 + $0x8] sm:$0xf]
          %v686 = vld [vmem:[#allocation8 + $0xc] sm:$0xf]
          %v687 = vld [vmem:[%s5] sm:$0x1]
          %v689 = vperm.slane %v687, 0
          %v695 = vunpack.c.l.b16 %v683
          %v696 = vunpack.c.l.b16 %v684
          %v697 = vunpack.c.l.b16 %v685
          %v698 = vunpack.c.l.b16 %v686
          %v699 = vpack.c.b16 %v696, %v695
          %v700 = vpack.c.b16 %v698, %v697
          %vm703 = vcmask 261120
          %v705 = vsel %vm703, %v682, 0
          %707 = vmatpush.bf16.msra.mxu0 0
          %708 = vmatpush.bf16.msra.mxu0 0
          %709 = vmatpush.bf16.msra.mxu0 0
          %710 = vmatpush.bf16.msra.mxu0 0
          %711 = vmatpush.bf16.msra.mxu0 0
          %712 = vmatpush.bf16.msra.mxu0 0
          %713 = vmatpush.bf16.msra.mxu0 %v700
          %714 = vmatpush.bf16.msra.mxu0 %v699
          %715 = vmatmul.bf16.gmra.mxu0 %v705
          %v716 = vpop.f32.mrf.mxu0
          %v717 = vadd.f32 %v689, %v716
          %v718 = vpop.f32.mrf.mxu0
          %v719 = vadd.f32 %v689, %v718
          %720 = vdwg.mxu0
          %v721 = vpack.c.bf16 %v677, %v676
          %v722 = vld [vmem:[#allocation10] sm:$0xf]
          %v723 = vld [vmem:[#allocation10 + $0x4] sm:$0xf]
          %v724 = vld [vmem:[#allocation10 + $0x8] sm:$0xf]
          %v725 = vld [vmem:[#allocation10 + $0xc] sm:$0xf]
          %v726 = vld [vmem:[%s7] sm:$0x1]
          %v728 = vperm.slane %v726, 0
          %v734 = vunpack.c.l.b16 %v722
          %v735 = vunpack.c.l.b16 %v723
          %v736 = vunpack.c.l.b16 %v724
          %v737 = vunpack.c.l.b16 %v725
          %v738 = vpack.c.b16 %v735, %v734
          %v739 = vpack.c.b16 %v737, %v736
          %v743 = vsel %vm703, %v721, 0
          %745 = vmatpush.bf16.msra.mxu0 0
          %746 = vmatpush.bf16.msra.mxu0 0
          %747 = vmatpush.bf16.msra.mxu0 0
          %748 = vmatpush.bf16.msra.mxu0 0
          %749 = vmatpush.bf16.msra.mxu0 0
          %750 = vmatpush.bf16.msra.mxu0 0
          %751 = vmatpush.bf16.msra.mxu0 %v739
          %752 = vmatpush.bf16.msra.mxu0 %v738
          %753 = vmatmul.bf16.gmra.mxu0 %v743
          %v754 = vpop.f32.mrf.mxu0
          %v755 = vadd.f32 %v728, %v754
          %v756 = vpop.f32.mrf.mxu0
          %v757 = vadd.f32 %v728, %v756
          %758 = vdwg.mxu0
          %v759 = vpack.c.bf16 %v717, %v717
          %v760 = vpack.c.bf16 %v719, %v719
          %vm761 = vcmask 257024
          %762 = vst.msk [vmem:[#allocation2] sm:$0xf] %vm761, %v759
          %763 = vst.msk [vmem:[#allocation2 + $0x4] sm:$0xf] %vm761, %v760
          %v764 = vpack.c.bf16 %v755, %v755
          %v765 = vpack.c.bf16 %v757, %v757
          %766 = vst.msk [vmem:[#allocation3] sm:$0xf] %vm761, %v764
          %767 = vst.msk [vmem:[#allocation3 + $0x4] sm:$0xf] %vm761, %v765
        $region116: #{tpu_custom_call.1} parent=91 // pred_fallthru
          _
        %s768 = smul.u32 %s40, 8
        %s769 = scalar_lea.vmem %s670, %s768
        %v770 = vld [vmem:[%s769] sm:$0xff]
        %s771 = scalar_lea.vmem %s1, %s768
        %v772 = vld [vmem:[%s771] sm:$0xff]
        %v773 = vadd.f32 %v770, %v772
        %v774 = vpack.c.bf16 %v773, %v773
        %v775 = vld [vmem:[#allocation5] sm:$0xf]
        %v776 = vld [vmem:[#allocation5 + $0x4] sm:$0xf]
        %v777 = vld [vmem:[#allocation5 + $0x8] sm:$0xf]
        %v778 = vld [vmem:[#allocation5 + $0xc] sm:$0xf]
        %v779 = vld [vmem:[%s3] sm:$0x1]
        %v781 = vperm.slane %v779, 0
        %v787 = vunpack.c.l.b16 %v775
        %v788 = vunpack.c.l.b16 %v776
        %v789 = vunpack.c.l.b16 %v777
        %v790 = vunpack.c.l.b16 %v778
        %v791 = vpack.c.b16 %v788, %v787
        %v792 = vpack.c.b16 %v790, %v789
        %vm795 = vcmask 261120
        %v797 = vsel %vm795, %v774, 0
        %799 = vmatpush.bf16.msra.mxu0 0
        %800 = vmatpush.bf16.msra.mxu0 0
        %801 = vmatpush.bf16.msra.mxu0 0
        %802 = vmatpush.bf16.msra.mxu0 0
        %803 = vmatpush.bf16.msra.mxu0 0
        %804 = vmatpush.bf16.msra.mxu0 0
        %805 = vmatpush.bf16.msra.mxu0 %v792
        %806 = vmatpush.bf16.msra.mxu0 %v791
        %807 = vmatmul.bf16.gmra.mxu0 %v797
        %v808 = vpop.f32.mrf.mxu0
        %v809 = vadd.f32 %v781, %v808
        %v810 = vpop.f32.mrf.mxu0
        %811 = vdwg.mxu0
        %v812 = vpack.c.bf16 %v809, %v809
        %v813 = vld [vmem:[#allocation2] sm:$0xf]
        %v814 = vld [vmem:[#allocation2 + $0x4] sm:$0xf]
        %v815 = vld [vmem:[#allocation3] sm:$0xf]
        %v816 = vld [vmem:[#allocation3 + $0x4] sm:$0xf]
        %v819 = vunpack.c.l.b16 %v813
        %v820 = vunpack.c.l.b16 %v814
        %v821 = vpack.c.b16 %v820, %v819
        %vm822 = vcmask 64512
        %v824 = vsel %vm822, %v812, 0
        %v827 = vsel %vm822, %v821, 0
        %829 = vmatpush.bf16.xpose.msra.mxu0 0
        %830 = vmatpush.bf16.xpose.msra.mxu0 0
        %831 = vmatpush.bf16.xpose.msra.mxu0 0
        %832 = vmatpush.bf16.xpose.msra.mxu0 0
        %833 = vmatpush.bf16.xpose.msra.mxu0 0
        %834 = vmatpush.bf16.xpose.msra.mxu0 0
        %835 = vmatpush.bf16.xpose.msra.mxu0 0
        %836 = vmatpush.bf16.xpose.msra.mxu0 %v827
        %837 = vmatmul.bf16.gmra.mxu0 %v824
        %v838 = vpop.f32.mrf.mxu0
        %v839 = vadd.f32 0.0, %v838
        %v840 = vpop.f32.mrf.mxu0
        %841 = vdwg.mxu0
        %vm842 = vcmask 130048
        %v843 = vsel %vm842, %v839, -inf
        %844 = vmax.xlane.f32.xlu0 %v843
        %v845 = vpop.xlane.xlu0 %844
        %v846 = vsub.f32 %v839, %v845
        %v847 = vmul.f32 %v846, 1.442695
        %v848 = vpow.pop %v847
        %v849 = vsel %vm842, %v848, 0.0
        %850 = vadd.xlane.f32.xlu0 %v849
        %v851 = vpop.xlane.xlu0 %850
        %v852 = vrcp.pop %v851
        %v853 = vpack.c.bf16 %v848, %v848
        %v856 = vunpack.c.l.b16 %v815
        %v857 = vunpack.c.l.b16 %v816
        %v858 = vpack.c.b16 %v857, %v856
        %v861 = vsel %vm842, %v853, 0
        %863 = vmatpush.bf16.msra.mxu0 0
        %864 = vmatpush.bf16.msra.mxu0 0
        %865 = vmatpush.bf16.msra.mxu0 0
        %866 = vmatpush.bf16.msra.mxu0 0
        %867 = vmatpush.bf16.msra.mxu0 0
        %868 = vmatpush.bf16.msra.mxu0 0
        %869 = vmatpush.bf16.msra.mxu0 0
        %870 = vmatpush.bf16.msra.mxu0 %v858
        %871 = vmatmul.bf16.gmra.mxu0 %v861
        %v872 = vpop.f32.mrf.mxu0
        %v873 = vadd.f32 0.0, %v872
        %v874 = vpop.f32.mrf.mxu0
        %875 = vdwg.mxu0
        %v876 = vmul.f32 %v873, %v852
        %v877 = vpack.c.bf16 %v876, %v876
        %vm878 = vcmask 60416
        %879 = vst.msk [vmem:[#allocation4] sm:$0xf] %vm878, %v877
        %v881 = vunpack.c.l.b16 %v812
        %v882 = vpack.c.b16 %v881, %v881
        %883 = vrot.lane.b32.xlu0 %v882, 120
        %v884 = vpop.permute.xlu0 %883
        %885 = vrot.lane.b32.xlu0 %v821, 120
        %v886 = vpop.permute.xlu0 %885
        %v888 = vsel %vm822, %v884, 0
        %v891 = vsel %vm822, %v886, 0
        %893 = vmatpush.bf16.xpose.msra.mxu0 0
        %894 = vmatpush.bf16.xpose.msra.mxu0 0
        %895 = vmatpush.bf16.xpose.msra.mxu0 0
        %896 = vmatpush.bf16.xpose.msra.mxu0 0
        %897 = vmatpush.bf16.xpose.msra.mxu0 0
        %898 = vmatpush.bf16.xpose.msra.mxu0 0
        %899 = vmatpush.bf16.xpose.msra.mxu0 0
        %900 = vmatpush.bf16.xpose.msra.mxu0 %v891
        %901 = vmatmul.bf16.gmra.mxu0 %v888
        %v902 = vpop.f32.mrf.mxu0
        %v903 = vadd.f32 0.0, %v902
        %v904 = vpop.f32.mrf.mxu0
        %905 = vdwg.mxu0
        %v906 = vsel %vm842, %v903, -inf
        %907 = vmax.xlane.f32.xlu0 %v906
        %v908 = vpop.xlane.xlu0 %907
        %v909 = vsub.f32 %v903, %v908
        %v910 = vmul.f32 %v909, 1.442695
        %v911 = vpow.pop %v910
        %v912 = vsel %vm842, %v911, 0.0
        %913 = vadd.xlane.f32.xlu0 %v912
        %v914 = vpop.xlane.xlu0 %913
        %v915 = vrcp.pop %v914
        %v916 = vpack.c.bf16 %v911, %v911
        %917 = vrot.lane.b32.xlu0 %v858, 120
        %v918 = vpop.permute.xlu0 %917
        %v921 = vsel %vm842, %v916, 0
        %923 = vmatpush.bf16.msra.mxu0 0
        %924 = vmatpush.bf16.msra.mxu0 0
        %925 = vmatpush.bf16.msra.mxu0 0
        %926 = vmatpush.bf16.msra.mxu0 0
        %927 = vmatpush.bf16.msra.mxu0 0
        %928 = vmatpush.bf16.msra.mxu0 0
        %929 = vmatpush.bf16.msra.mxu0 0
        %930 = vmatpush.bf16.msra.mxu0 %v918
        %931 = vmatmul.bf16.gmra.mxu0 %v921
        %v932 = vpop.f32.mrf.mxu0
        %v933 = vadd.f32 0.0, %v932
        %v934 = vpop.f32.mrf.mxu0
        %935 = vdwg.mxu0
        %v936 = vmul.f32 %v933, %v915
        %v937 = vpack.c.bf16 %v936, %v936
        %939 = vrot.lane.b32.xlu0 %v937, 8
        %v940 = vpop.permute.xlu0 %939
        %vm942 = vcmask 126016
        %943 = vst.msk [vmem:[#allocation4] sm:$0xf] %vm942, %v940
        %944 = vrot.lane.b32.xlu0 %v882, 112
        %v945 = vpop.permute.xlu0 %944
        %946 = vrot.lane.b32.xlu0 %v821, 112
        %v947 = vpop.permute.xlu0 %946
        %v949 = vsel %vm822, %v945, 0
        %v952 = vsel %vm822, %v947, 0
        %954 = vmatpush.bf16.xpose.msra.mxu0 0
        %955 = vmatpush.bf16.xpose.msra.mxu0 0
        %956 = vmatpush.bf16.xpose.msra.mxu0 0
        %957 = vmatpush.bf16.xpose.msra.mxu0 0
        %958 = vmatpush.bf16.xpose.msra.mxu0 0
        %959 = vmatpush.bf16.xpose.msra.mxu0 0
        %960 = vmatpush.bf16.xpose.msra.mxu0 0
        %961 = vmatpush.bf16.xpose.msra.mxu0 %v952
        %962 = vmatmul.bf16.gmra.mxu0 %v949
        %v963 = vpop.f32.mrf.mxu0
        %v964 = vadd.f32 0.0, %v963
        %v965 = vpop.f32.mrf.mxu0
        %966 = vdwg.mxu0
        %v967 = vsel %vm842, %v964, -inf
        %968 = vmax.xlane.f32.xlu0 %v967
        %v969 = vpop.xlane.xlu0 %968
        %v970 = vsub.f32 %v964, %v969
        %v971 = vmul.f32 %v970, 1.442695
        %v972 = vpow.pop %v971
        %v973 = vsel %vm842, %v972, 0.0
        %974 = vadd.xlane.f32.xlu0 %v973
        %v975 = vpop.xlane.xlu0 %974
        %v976 = vrcp.pop %v975
        %v977 = vpack.c.bf16 %v972, %v972
        %978 = vrot.lane.b32.xlu0 %v858, 112
        %v979 = vpop.permute.xlu0 %978
        %v982 = vsel %vm842, %v977, 0
        %984 = vmatpush.bf16.msra.mxu0 0
        %985 = vmatpush.bf16.msra.mxu0 0
        %986 = vmatpush.bf16.msra.mxu0 0
        %987 = vmatpush.bf16.msra.mxu0 0
        %988 = vmatpush.bf16.msra.mxu0 0
        %989 = vmatpush.bf16.msra.mxu0 0
        %990 = vmatpush.bf16.msra.mxu0 0
        %991 = vmatpush.bf16.msra.mxu0 %v979
        %992 = vmatmul.bf16.gmra.mxu0 %v982
        %v993 = vpop.f32.mrf.mxu0
        %v994 = vadd.f32 0.0, %v993
        %v995 = vpop.f32.mrf.mxu0
        %996 = vdwg.mxu0
        %v997 = vmul.f32 %v994, %v976
        %v998 = vpack.c.bf16 %v997, %v997
        %1000 = vrot.lane.b32.xlu0 %v998, 16
        %v1001 = vpop.permute.xlu0 %1000
        %vm1003 = vcmask 191616
        %1004 = vst.msk [vmem:[#allocation4] sm:$0xf] %vm1003, %v1001
        %1005 = vrot.lane.b32.xlu0 %v882, 104
        %v1006 = vpop.permute.xlu0 %1005
        %1007 = vrot.lane.b32.xlu0 %v821, 104
        %v1008 = vpop.permute.xlu0 %1007
        %v1010 = vsel %vm822, %v1006, 0
        %v1013 = vsel %vm822, %v1008, 0
        %1015 = vmatpush.bf16.xpose.msra.mxu0 0
        %1016 = vmatpush.bf16.xpose.msra.mxu0 0
        %1017 = vmatpush.bf16.xpose.msra.mxu0 0
        %1018 = vmatpush.bf16.xpose.msra.mxu0 0
        %1019 = vmatpush.bf16.xpose.msra.mxu0 0
        %1020 = vmatpush.bf16.xpose.msra.mxu0 0
        %1021 = vmatpush.bf16.xpose.msra.mxu0 0
        %1022 = vmatpush.bf16.xpose.msra.mxu0 %v1013
        %1023 = vmatmul.bf16.gmra.mxu0 %v1010
        %v1024 = vpop.f32.mrf.mxu0
        %v1025 = vadd.f32 0.0, %v1024
        %v1026 = vpop.f32.mrf.mxu0
        %1027 = vdwg.mxu0
        %v1028 = vsel %vm842, %v1025, -inf
        %1029 = vmax.xlane.f32.xlu0 %v1028
        %v1030 = vpop.xlane.xlu0 %1029
        %v1031 = vsub.f32 %v1025, %v1030
        %v1032 = vmul.f32 %v1031, 1.442695
        %v1033 = vpow.pop %v1032
        %v1034 = vsel %vm842, %v1033, 0.0
        %1035 = vadd.xlane.f32.xlu0 %v1034
        %v1036 = vpop.xlane.xlu0 %1035
        %v1037 = vrcp.pop %v1036
        %v1038 = vpack.c.bf16 %v1033, %v1033
        %1039 = vrot.lane.b32.xlu0 %v858, 104
        %v1040 = vpop.permute.xlu0 %1039
        %v1043 = vsel %vm842, %v1038, 0
        %1045 = vmatpush.bf16.msra.mxu0 0
        %1046 = vmatpush.bf16.msra.mxu0 0
        %1047 = vmatpush.bf16.msra.mxu0 0
        %1048 = vmatpush.bf16.msra.mxu0 0
        %1049 = vmatpush.bf16.msra.mxu0 0
        %1050 = vmatpush.bf16.msra.mxu0 0
        %1051 = vmatpush.bf16.msra.mxu0 0
        %1052 = vmatpush.bf16.msra.mxu0 %v1040
        %1053 = vmatmul.bf16.gmra.mxu0 %v1043
        %v1054 = vpop.f32.mrf.mxu0
        %v1055 = vadd.f32 0.0, %v1054
        %v1056 = vpop.f32.mrf.mxu0
        %1057 = vdwg.mxu0
        %v1058 = vmul.f32 %v1055, %v1037
        %v1059 = vpack.c.bf16 %v1058, %v1058
        %1061 = vrot.lane.b32.xlu0 %v1059, 24
        %v1062 = vpop.permute.xlu0 %1061
        %vm1064 = vcmask 257216
        %1065 = vst.msk [vmem:[#allocation4] sm:$0xf] %vm1064, %v1062
        %v1066 = vld [vmem:[#allocation4] sm:$0xf]
        %v1067 = vld [vmem:[#allocation11] sm:$0xf]
        %v1068 = vld [vmem:[#allocation11 + $0x4] sm:$0xf]
        %v1069 = vld [vmem:[#allocation11 + $0x8] sm:$0xf]
        %v1070 = vld [vmem:[#allocation11 + $0xc] sm:$0xf]
        %v1071 = vld [vmem:[%s9] sm:$0x1]
        %v1073 = vperm.slane %v1071, 0
        %v1079 = vunpack.c.l.b16 %v1067
        %v1080 = vunpack.c.l.b16 %v1068
        %v1081 = vunpack.c.l.b16 %v1069
        %v1082 = vunpack.c.l.b16 %v1070
        %v1083 = vpack.c.b16 %v1080, %v1079
        %v1084 = vpack.c.b16 %v1082, %v1081
        %v1088 = vsel %vm795, %v1066, 0
        %1090 = vmatpush.bf16.msra.mxu0 0
        %1091 = vmatpush.bf16.msra.mxu0 0
        %1092 = vmatpush.bf16.msra.mxu0 0
        %1093 = vmatpush.bf16.msra.mxu0 0
        %1094 = vmatpush.bf16.msra.mxu0 0
        %1095 = vmatpush.bf16.msra.mxu0 0
        %1096 = vmatpush.bf16.msra.mxu0 %v1084
        %1097 = vmatpush.bf16.msra.mxu0 %v1083
        %1098 = vmatmul.bf16.gmra.mxu0 %v1088
        %v1099 = vpop.f32.mrf.mxu0
        %v1100 = vadd.f32 %v1073, %v1099
        %v1101 = vpop.f32.mrf.mxu0
        %1102 = vdwg.mxu0
        %v1103 = vadd.f32 %v770, %v1100
        %v1104 = vld [vmem:[%s10] sm:$0x1]
        %v1105 = vld [vmem:[%s11] sm:$0x1]
        %v1106 = vsel %vm795, %v1103, 0.0
        %1107 = vadd.xlane.f32.xlu0 %v1106
        %v1108 = vpop.xlane.xlu0 %1107
        %v1109 = vrcp.pop 32.0
        %v1110 = vmul.f32 32.0, %v1109
        %v1111 = vsub.f32 1.0, %v1110
        %v1112 = vmul.f32 %v1109, %v1111
        %v1113 = vadd.f32 %v1109, %v1112
        %vm1114 = vweird.f32 %v1109
        %v1115 = vsel %vm1114, %v1109, %v1113
        %v1116 = vmul.f32 %v1108, %v1115
        %v1117 = vsub.f32 %v1103, %v1116
        %v1118 = vmul.f32 %v1117, %v1117
        %v1119 = vsel %vm795, %v1118, 0.0
        %1120 = vadd.xlane.f32.xlu0 %v1119
        %v1121 = vpop.xlane.xlu0 %1120
        %v1122 = vmul.f32 %v1121, %v1115
        %v1123 = vadd.f32 %v1122, 1e-05
        %v1124 = vrsqrt.pop %v1123
        %v1125 = vmul.f32 %v1124, %v1123
        %v1126 = vmul.f32 %v1125, %v1124
        %v1127 = vmul.f32 0.5, %v1126
        %v1128 = vsub.f32 1.5, %v1127
        %v1129 = vmul.f32 %v1124, %v1128
        %vm1130 = vweird.f32 %v1123
        %vm1131 = vweird.f32 %v1124
        %vm1132 = vmor %vm1130, %vm1131
        %v1133 = vsel %vm1132, %v1124, %v1129
        %v1134 = vmul.f32 %v1117, %v1133
        %v1136 = vperm.slane %v1104, 0
        %v1138 = vmul.f32 %v1134, %v1136
        %v1140 = vperm.slane %v1105, 0
        %v1142 = vadd.f32 %v1138, %v1140
        %v1143 = vpack.c.bf16 %v1142, %v1142
        %v1144 = vld [vmem:[#allocation13] sm:$0xf]
        %v1145 = vld [vmem:[#allocation13 + $0x4] sm:$0xf]
        %v1146 = vld [vmem:[#allocation13 + $0x8] sm:$0xf]
        %v1147 = vld [vmem:[#allocation13 + $0xc] sm:$0xf]
        %v1148 = vld [vmem:[%s13] sm:$0x1]
        %v1150 = vperm.slane %v1148, 0
        %v1156 = vunpack.c.l.b16 %v1144
        %v1157 = vunpack.c.l.b16 %v1145
        %v1158 = vunpack.c.l.b16 %v1146
        %v1159 = vunpack.c.l.b16 %v1147
        %v1160 = vpack.c.b16 %v1157, %v1156
        %v1161 = vpack.c.b16 %v1159, %v1158
        %v1165 = vsel %vm795, %v1143, 0
        %1167 = vmatpush.bf16.msra.mxu0 0
        %1168 = vmatpush.bf16.msra.mxu0 0
        %1169 = vmatpush.bf16.msra.mxu0 0
        %1170 = vmatpush.bf16.msra.mxu0 0
        %1171 = vmatpush.bf16.msra.mxu0 0
        %1172 = vmatpush.bf16.msra.mxu0 0
        %1173 = vmatpush.bf16.msra.mxu0 %v1161
        %1174 = vmatpush.bf16.msra.mxu0 %v1160
        %1175 = vmatmul.bf16.gmra.mxu0 %v1165
        %v1176 = vpop.f32.mrf.mxu0
        %v1177 = vadd.f32 %v1150, %v1176
        %v1178 = vpop.f32.mrf.mxu0
        %1179 = vdwg.mxu0
        %v1180 = vmul.f32 %v1177, 0.5
        %v1181 = vmul.f32 %v1177, 0.70710677
        %vm1182 = vcmp.ge.f32.partialorder %v1181, 0.0
        %v1183 = vsel %vm1182, 1.0, -1.0
        %v1184 = vand.u32 2147483647, %v1181
        %v1185 = vmul.f32 %v1184, 0.3275911
        %v1186 = vadd.f32 %v1185, 1.0
        %v1187 = vrcp.pop %v1186
        %v1188 = vmul.f32 %v1186, %v1187
        %v1189 = vsub.f32 1.0, %v1188
        %v1190 = vmul.f32 %v1187, %v1189
        %v1191 = vadd.f32 %v1187, %v1190
        %vm1192 = vweird.f32 %v1186
        %vm1193 = vweird.f32 %v1187
        %vm1194 = vmor %vm1192, %vm1193
        %v1195 = vsel %vm1194, %v1187, %v1191
        %v1196 = vand.u32 2147483647, %v1186
        %vm1197 = vcmp.eq.f32.partialorder %v1196, 8.507059e+37
        %v1198 = vand.u32 %v1186, 2147483648
        %v1199 = vor.u32 1.1754944e-38, %v1198
        %v1200 = vsel %vm1197, %v1199, %v1195
        %v1201 = vmul.f32 1.0, %v1200
        %v1202 = vmul.f32 %v1201, 1.0614054
        %v1203 = vadd.f32 %v1202, -1.4531521
        %v1204 = vmul.f32 %v1203, %v1201
        %v1205 = vadd.f32 %v1204, 1.4214138
        %v1206 = vmul.f32 %v1205, %v1201
        %v1207 = vadd.f32 %v1206, -0.28449672
        %v1208 = vmul.f32 %v1207, %v1201
        %v1209 = vadd.f32 %v1208, 0.2548296
        %v1210 = vmul.f32 %v1209, %v1201
        %v1211 = vsub.f32 0.0, %v1184
        %v1212 = vmul.f32 %v1211, %v1184
        %v1213 = vmul.f32 %v1212, 1.442695
        %v1214 = vpow.pop %v1213
        %v1215 = vmul.f32 %v1210, %v1214
        %v1216 = vsub.f32 1.0, %v1215
        %v1217 = vmul.f32 %v1183, %v1216
        %v1218 = vadd.f32 %v1217, 1.0
        %v1219 = vmul.f32 %v1180, %v1218
        %v1220 = vpack.c.bf16 %v1219, %v1219
        %v1221 = vld [vmem:[%s14] sm:$0xf]
        %v1222 = vld [vmem:[%s14 + $0x4] sm:$0xf]
        %v1223 = vld [vmem:[%s14 + $0x8] sm:$0xf]
        %v1224 = vld [vmem:[%s14 + $0xc] sm:$0xf]
        %v1225 = vld [vmem:[%s14 + $0x10] sm:$0xf]
        %v1226 = vld [vmem:[%s14 + $0x14] sm:$0xf]
        %v1227 = vld [vmem:[%s14 + $0x18] sm:$0xf]
        %v1228 = vld [vmem:[%s14 + $0x1c] sm:$0xf]
        %v1229 = vld [vmem:[%s15] sm:$0x1]
        %v1231 = vperm.slane %v1229, 0
        %v1241 = vunpack.c.l.b16 %v1221
        %v1242 = vunpack.c.l.b16 %v1222
        %v1243 = vunpack.c.l.b16 %v1223
        %v1244 = vunpack.c.l.b16 %v1224
        %v1245 = vunpack.c.l.b16 %v1225
        %v1246 = vunpack.c.l.b16 %v1226
        %v1247 = vunpack.c.l.b16 %v1227
        %v1248 = vunpack.c.l.b16 %v1228
        %v1249 = vpack.c.b16 %v1242, %v1241
        %v1250 = vpack.c.b16 %v1244, %v1243
        %v1251 = vpack.c.b16 %v1246, %v1245
        %v1252 = vpack.c.b16 %v1248, %v1247
        %vm1257 = vcmask 523264
        %v1259 = vsel %vm1257, %v1220, 0
        %1261 = vmatpush.bf16.msra.mxu0 0
        %1262 = vmatpush.bf16.msra.mxu0 0
        %1263 = vmatpush.bf16.msra.mxu0 0
        %1264 = vmatpush.bf16.msra.mxu0 0
        %1265 = vmatpush.bf16.msra.mxu0 %v1252
        %1266 = vmatpush.bf16.msra.mxu0 %v1251
        %1267 = vmatpush.bf16.msra.mxu0 %v1250
        %1268 = vmatpush.bf16.msra.mxu0 %v1249
        %1269 = vmatmul.bf16.gmra.mxu0 %v1259
        %v1270 = vpop.f32.mrf.mxu0
        %v1271 = vadd.f32 %v1231, %v1270
        %v1272 = vpop.f32.mrf.mxu0
        %1273 = vdwg.mxu0
        %v1274 = vadd.f32 %v1142, %v1271
        %v1275 = vld [vmem:[%s16] sm:$0x1]
        %v1276 = vld [vmem:[%s17] sm:$0x1]
        %v1277 = vsel %vm795, %v1274, 0.0
        %1278 = vadd.xlane.f32.xlu0 %v1277
        %v1279 = vpop.xlane.xlu0 %1278
        %v1280 = vmul.f32 %v1279, %v1115
        %v1281 = vsub.f32 %v1274, %v1280
        %v1282 = vmul.f32 %v1281, %v1281
        %v1283 = vsel %vm795, %v1282, 0.0
        %1284 = vadd.xlane.f32.xlu0 %v1283
        %v1285 = vpop.xlane.xlu0 %1284
        %v1286 = vmul.f32 %v1285, %v1115
        %v1287 = vadd.f32 %v1286, 1e-05
        %v1288 = vrsqrt.pop %v1287
        %v1289 = vmul.f32 %v1288, %v1287
        %v1290 = vmul.f32 %v1289, %v1288
        %v1291 = vmul.f32 0.5, %v1290
        %v1292 = vsub.f32 1.5, %v1291
        %v1293 = vmul.f32 %v1288, %v1292
        %vm1294 = vweird.f32 %v1287
        %vm1295 = vweird.f32 %v1288
        %vm1296 = vmor %vm1294, %vm1295
        %v1297 = vsel %vm1296, %v1288, %v1293
        %v1298 = vmul.f32 %v1281, %v1297
        %v1300 = vperm.slane %v1275, 0
        %v1302 = vmul.f32 %v1298, %v1300
        %v1304 = vperm.slane %v1276, 0
        %v1306 = vadd.f32 %v1302, %v1304
        %1307 = vst.msk [vmem:[%s665] sm:$0xff] %vm795, %v1306
        %s1308 = sand.u32 %s440, 1
        %s1309 = scalar_lea.sflag [#allocation7], %s1308
        %s1310 = sand.u32 %s440, 1
        %s1311 = smul.addr %s1310, 8
        %s1312 = scalar_lea.vmem [#allocation14], %s1311
        // Predicated region
        $region117: #{tpu_custom_call.1} parent=91 // pred_check
          %p1313 = pneg %p450
        $region118: #{tpu_custom_call.1} parent=91 // pred_check_branch
          %1315 = sbr.rel (%p1313) target = $region120
        $region119: #{tpu_custom_call.1} parent=91 // pred_region
          %1317 = vsyncadd %s1309, 0
          %s1318 = smul.addr %s39, 2
          %s1319 = sadd.s32 %s40, %s1318
          %s1320 = smul.addr %s1319, 8
          %s1321 = scalar_lea.hbm %s18, %s1320
          %s1323 = sshll.u32 %s1312, 4
          %s1324 = int_to_ptr.vmem [resolvable:$true] %s1323
          %s1325 = sshll.u32 %s1321, 4
          %s1326 = int_to_ptr.hbm [resolvable:$true] %s1325
          %1328 = dma.vmem_to_hbm [thread:$0]  %s1324, 128, %s1326, %s1309
        $region120: #{tpu_custom_call.1} parent=91 // pred_fallthru
          _
      $region92: #{tpu_custom_call.1} parent=5 // pred_fallthru
        _
      %p1329 = scmp.le.s32.totalorder 2, %s30
      // Predicated region
      $region121: #{tpu_custom_call.1} parent=5 // pred_check
        %p1330 = pneg %p1329
      $region122: #{tpu_custom_call.1} parent=5 // pred_check_branch
        %1332 = sbr.rel (%p1330) target = $region124
      $region123: #{tpu_custom_call.1} parent=5 // pred_region
        %s1333 = ssub.s32 %s30, 2
        // Predicated region
        $region125: #{tpu_custom_call.1} parent=123 // pred_check
          %p1334 = pneg %p456
        $region126: #{tpu_custom_call.1} parent=123 // pred_check_branch
          %1336 = sbr.rel (%p1334) target = $region128
        $region127: #{tpu_custom_call.1} parent=123 // pred_region
          %s1337 = sand.u32 %s441, 1
          %s1338 = scalar_lea.sflag [#allocation7], %s1337
          %s1339 = sand.u32 %s441, 1
          %s1340 = smul.addr %s1339, 8
          %s1341 = scalar_lea.vmem [#allocation14], %s1340
          %1343 = dma.done %s1338, 128
        $region128: #{tpu_custom_call.1} parent=123 // pred_fallthru
          _
      $region124: #{tpu_custom_call.1} parent=5 // pred_fallthru
        _
    $region6: #{tpu_custom_call.1} parent=1 // loop_footer
      %s34 = sadd.s32 1, %s30
    $region7: #{tpu_custom_call.1} parent=1 // loop_footer_branch
      %29 = sbr.rel target = $region3
    $region8: #{tpu_custom_call.1} parent=1 // loop_exit
      _
    %1344 = vsyncpa [#allocation6], 1
    %s1345 = scalar_lea.sflag [#allocation6], 1
    %1346 = vsyncpa %s1345, 1
    %1347 = vsyncpa [#allocation9], 1
    %1348 = vsyncpa [#allocation12], 1
    %1349 = vsyncpa [#allocation7], 1
    %s1350 = scalar_lea.sflag [#allocation7], 1
    %1351 = vsyncpa %s1350, 1

</llo_original>
